<compile_context>
chip_gen: v7x
topology: tpu7x:2x2x1
jax: 0.10.0
libtpu: 0.0.40
codegen_flags: <defaults>
</compile_context>

<pallas_src>
import numpy as np
import jax
import jax.numpy as jnp
from jax import lax
from jax.experimental import pallas as pl
from jax.experimental.pallas import tpu as pltpu


_TAPS = [(ky - 1, kx - 1) for ky in range(3) for kx in range(3)]  # k = ky*3 + kx


def _ceil_to(x, m):
    return (x + m - 1) // m * m


def _make_fused_kernel(H, W, nb, ca, col_dtype):
    """Fused conv1->conv2->conv3 kernel; nb images folded onto the lane axis."""
    HW = H * W
    L = nb * HW
    # Tap (dy, dx) reads flat index i + dy*W + dx  ->  roll by -(dy*W + dx),
    # taken modulo the FULL folded lane length L (not HW).
    shifts = [(-(dy * W + dx)) % L for dy, dx in _TAPS]

    def kernel(x_ref, m_ref, w1_ref, t1_ref, w2_ref, t2_ref, w3_ref, t3_ref,
               o_ref, act_ref, cols_ref):
        # ---- fold nb images onto lanes: aligned lane-offset copies (no XLU) ----
        for b in range(nb):
            act_ref[:, b * HW:(b + 1) * HW] = x_ref[b]
        h = act_ref[...]                                  # (ca, L) f32

        def conv_bn_relu(h, w_ref, t_ref):
            # Masked roll-im2col written straight into the persistent VMEM
            # scratch; masks are pre-broadcast in the wrapper, so there is no
            # broadcast_in_dim here at all.
            for k, (dy, dx) in enumerate(_TAPS):
                s = shifts[k]
                rolled = h if s == 0 else pltpu.roll(h, s, axis=1)   # XLU rotate
                if (dy, dx) != (0, 0):
                    # zero SAME-padding + zero cross-image roll wrap (f32 VALU)
                    rolled = rolled * m_ref[k * ca:(k + 1) * ca, :]
                cols_ref[k * ca:(k + 1) * ca, :] = rolled.astype(col_dtype)
            # One MXU contraction per layer: (Cout_p, 9*ca) @ (9*ca, nb*HW).
            y = jnp.dot(w_ref[...], cols_ref[...],
                        preferred_element_type=jnp.float32)
            return jnp.maximum(y + t_ref[...], 0.0)       # f32 folded-BN shift + ReLU

        h = conv_bn_relu(h, w1_ref, t1_ref)               # (ca, L)
        h = conv_bn_relu(h, w2_ref, t2_ref)               # (ca, L)
        h = conv_bn_relu(h, w3_ref, t3_ref)               # (co_p, L)

        # ---- un-fold: full padded-channel, lane-aligned stores (no vst.msk) ----
        for b in range(nb):
            o_ref[b] = h[:, b * HW:(b + 1) * HW]

    return kernel


def _tap_mask_slab(H, W, nb, ca):
    """(9*ca, nb*H*W) f32 mask slab, pre-broadcast over sublanes and tiled per
    image (period H*W) so cross-image roll wrap is zeroed."""
    y = np.arange(H)[:, None]
    x = np.arange(W)[None, :]
    blocks = []
    for dy, dx in _TAPS:
        ok = ((y + dy >= 0) & (y + dy < H) & (x + dx >= 0) & (x + dx < W))
        row = np.tile(ok.astype(np.float32).reshape(-1), nb)       # (nb*HW,)
        blocks.append(np.broadcast_to(row, (ca, nb * H * W)))
    return jnp.asarray(np.concatenate(blocks, axis=0))             # (9*ca, nb*HW)


def _fold_conv_bn(p, ci_pad, co_pad, eps, w_dtype):
    """Fold eval-mode BN into the conv. Returns ((co_pad, 9*ci_pad), (co_pad, 1))."""
    w = p["w"].astype(jnp.float32)                        # (3, 3, ci, co) HWIO
    ci, co = w.shape[2], w.shape[3]
    scale = p["gamma"] / jnp.sqrt(p["var"] + eps)         # (co,)
    wmat = jnp.transpose(w * scale[None, None, None, :], (3, 0, 1, 2))  # (co,3,3,ci)
    wmat = wmat.reshape(co, 9, ci)
    wmat = jnp.pad(wmat, ((0, co_pad - co), (0, 0), (0, ci_pad - ci)))
    wmat = wmat.reshape(co_pad, 9 * ci_pad)
    shift = p["beta"] + (p["b"] - p["mean"]) * scale      # (co,)
    shift = jnp.pad(shift, (0, co_pad - co)).reshape(co_pad, 1)
    return wmat.astype(w_dtype), shift.astype(jnp.float32)


def fc_upconv3_apply(params, x_nchw, *, eps=1e-5, images_per_step=2,
                     compute_dtype=jnp.float32):
    """Forward matching fcUpConv3: conv1 -> conv2 -> conv3 (Conv3x3+BN+ReLU each).

    images_per_step (NB) images are folded onto the lane axis per grid step.
    compute_dtype controls the MXU operand dtype (f32 or bfloat16); BN shift,
    ReLU and masking always run in f32.
    """
    N, cin, H, W = x_nchw.shape
    HW = H * W
    mid = params[0]["w"].shape[3]
    out_size = params[2]["w"].shape[3]

    cdt = np.dtype(compute_dtype)
    sub = 8 * (4 // cdt.itemsize)               # 8 sublanes for f32, 16 for bf16 (packed)
    ca = _ceil_to(max(cin, mid), sub)           # one padded width for all layer inputs
    co_p = _ceil_to(out_size, sub)              # padded output channels (sliced in wrapper)

    nb = max(1, min(int(images_per_step), N))
    n_pad = _ceil_to(N, nb)                     # pad batch with zero images if needed
    grid = (n_pad // nb,)
    L = nb * HW

    w1, t1 = _fold_conv_bn(params[0], ca, ca, eps, compute_dtype)
    w2, t2 = _fold_conv_bn(params[1], ca, ca, eps, compute_dtype)
    w3, t3 = _fold_conv_bn(params[2], ca, co_p, eps, compute_dtype)
    masks = _tap_mask_slab(H, W, nb, ca)        # pre-broadcast mask slab (9*ca, L)

    x = x_nchw.reshape(N, cin, HW).astype(jnp.float32)    # free reshape, lane-dense
    x = jnp.pad(x, ((0, n_pad - N), (0, ca - cin), (0, 0)))

    const2 = lambda n: (0, 0)
    out = pl.pallas_call(
        _make_fused_kernel(H, W, nb, ca, compute_dtype),
        out_shape=jax.ShapeDtypeStruct((n_pad, co_p, HW), jnp.float32),
        grid_spec=pltpu.PrefetchScalarGridSpec(
            num_scalar_prefetch=0,
            grid=grid,
            in_specs=[
                pl.BlockSpec((nb, ca, HW), lambda n: (n, 0, 0)),
                pl.BlockSpec(masks.shape, const2),
                pl.BlockSpec(w1.shape, const2),
                pl.BlockSpec(t1.shape, const2),
                pl.BlockSpec(w2.shape, const2),
                pl.BlockSpec(t2.shape, const2),
                pl.BlockSpec(w3.shape, const2),
                pl.BlockSpec(t3.shape, const2),
            ],
            out_specs=pl.BlockSpec((nb, co_p, HW), lambda n: (n, 0, 0)),
            scratch_shapes=[
                pltpu.VMEM((ca, L), jnp.float32),          # folded activation buffer
                pltpu.VMEM((9 * ca, L), compute_dtype),    # persistent im2col slab (all 3 layers)
            ],
        ),
        compiler_params=pltpu.CompilerParams(
            dimension_semantics=("parallel",),             # megacore: split image groups
            vmem_limit_bytes=32 * 1024 * 1024,             # <= v7x's 64 MiB per-TC budget
        ),
    )(x, masks, w1, t1, w2, t2, w3, t3)

    # Drop batch + channel padding in the wrapper (keeps in-kernel stores unmasked).
    return out[:N, :out_size, :].reshape(N, out_size, H, W)


def init_block_params(key, cin, cout):
    kw, kb, kg, kbeta, km, kv = jax.random.split(key, 6)
    fan_in = cin * 9
    w = jax.random.normal(kw, (3, 3, cin, cout), jnp.float32) / jnp.sqrt(fan_in)
    b = 0.05 * jax.random.normal(kb, (cout,), jnp.float32)
    gamma = 1.0 + 0.1 * jax.random.normal(kg, (cout,), jnp.float32)
    beta = 0.05 * jax.random.normal(kbeta, (cout,), jnp.float32)
    mean = 0.05 * jax.random.normal(km, (cout,), jnp.float32)
    var = 1.0 + 0.1 * jax.random.uniform(kv, (cout,), jnp.float32)
    return dict(w=w, b=b, gamma=gamma, beta=beta, mean=mean, var=var)


def fc_upconv3_init(key, in_size, out_size):
    mid = in_size // 2
    k1, k2, k3 = jax.random.split(key, 3)
    return [
        init_block_params(k1, in_size, mid),
        init_block_params(k2, mid, mid),
        init_block_params(k3, mid, out_size),
    ]


def _reference_apply(params, x_nchw, eps=1e-5):
    """Pure-JAX reference (lax conv) with the same eval-mode BN semantics."""
    x = jnp.transpose(x_nchw, (0, 2, 3, 1))
    for p in params:
        y = lax.conv_general_dilated(
            x, p["w"], window_strides=(1, 1), padding="SAME",
            dimension_numbers=("NHWC", "HWIO", "NHWC"))
        y = y + p["b"]
        y = (y - p["mean"]) / jnp.sqrt(p["var"] + eps) * p["gamma"] + p["beta"]
        x = jnp.maximum(y, 0.0)
    return jnp.transpose(x, (0, 3, 1, 2))


if __name__ == "__main__":
    key = jax.random.PRNGKey(0)
    k_param, k_x = jax.random.split(key)

    in_size, out_size = 8, 4
    N, H, W = 8, 16, 16            # N=8, NB=2 -> grid=(4,): >=2 steps per TC on v7x

    params = fc_upconv3_init(k_param, in_size, out_size)
    x = jax.random.normal(k_x, (N, in_size, H, W), jnp.float32)   # NCHW like PyTorch

    ref = jax.block_until_ready(_reference_apply(params, x))

    # f32 MXU operands (default): must match the f32 reference tightly.
    out = jax.block_until_ready(fc_upconv3_apply(params, x, images_per_step=2))
    assert out.shape == (N, out_size, H, W), out.shape
    max_err = float(jnp.max(jnp.abs(out - ref)))
    assert jnp.allclose(out, ref, atol=1e-4, rtol=1e-4), max_err

    # bf16 MXU operands (v6e/v7x optimization): f32 accumulate + f32 epilogue,
    # validated at a looser tolerance appropriate for bf16 inputs.
    out_bf16 = jax.block_until_ready(
        fc_upconv3_apply(params, x, images_per_step=2,
                         compute_dtype=jnp.bfloat16))
    max_err_bf16 = float(jnp.max(jnp.abs(out_bf16 - ref)))
    assert jnp.allclose(out_bf16, ref, atol=1e-1, rtol=1e-1), max_err_bf16

    print("KERNEL_OK")
</pallas_src>

<mosaic_0001>
module attributes {stable_mosaic.version = 11 : i64} {
  func.func @kernel(%arg0: i32, %arg1: memref<2x8x256xf32, #tpu.memory_space<vmem>>, %arg2: memref<72x512xf32, #tpu.memory_space<vmem>>, %arg3: memref<8x72xf32, #tpu.memory_space<vmem>>, %arg4: memref<8x1xf32, #tpu.memory_space<vmem>>, %arg5: memref<8x72xf32, #tpu.memory_space<vmem>>, %arg6: memref<8x1xf32, #tpu.memory_space<vmem>>, %arg7: memref<8x72xf32, #tpu.memory_space<vmem>>, %arg8: memref<8x1xf32, #tpu.memory_space<vmem>>, %arg9: memref<2x8x256xf32, #tpu.memory_space<vmem>>, %arg10: memref<8x512xf32, #tpu.memory_space<vmem>>, %arg11: memref<72x512xf32, #tpu.memory_space<vmem>>) attributes {dimension_semantics = [#tpu.dimension_semantics<parallel>], iteration_bounds = array<i64: 4>, scalar_prefetch = 0 : i64, scratch_operands = 2 : i64, tpu.core_type = #tpu.core_type<tc>, window_params = [{transform_indices = @transform_0, window_bounds = array<i64: 2, 8, 256>}, {pipeline_mode = #tpu.pipeline_mode<synchronous>, transform_indices = @transform_1, window_bounds = array<i64: 72, 512>}, {pipeline_mode = #tpu.pipeline_mode<synchronous>, transform_indices = @transform_2, window_bounds = array<i64: 8, 72>}, {pipeline_mode = #tpu.pipeline_mode<synchronous>, transform_indices = @transform_3, window_bounds = array<i64: 8, 1>}, {pipeline_mode = #tpu.pipeline_mode<synchronous>, transform_indices = @transform_4, window_bounds = array<i64: 8, 72>}, {pipeline_mode = #tpu.pipeline_mode<synchronous>, transform_indices = @transform_5, window_bounds = array<i64: 8, 1>}, {pipeline_mode = #tpu.pipeline_mode<synchronous>, transform_indices = @transform_6, window_bounds = array<i64: 8, 72>}, {pipeline_mode = #tpu.pipeline_mode<synchronous>, transform_indices = @transform_7, window_bounds = array<i64: 8, 1>}, {transform_indices = @transform_8, window_bounds = array<i64: 2, 8, 256>}]} {
    %c0 = arith.constant 0 : index
    %c0_0 = arith.constant 0 : index
    %c0_1 = arith.constant 0 : index
    %0 = vector.load %arg1[%c0, %c0_0, %c0_1] : memref<2x8x256xf32, #tpu.memory_space<vmem>>, vector<1x8x256xf32>
    %1 = vector.shape_cast %0 : vector<1x8x256xf32> to vector<8x256xf32>
    %c0_2 = arith.constant 0 : index
    %c0_3 = arith.constant 0 : index
    %2 = vector.load %arg10[%c0_2, %c0_3] : memref<8x512xf32, #tpu.memory_space<vmem>>, vector<8x256xf32>
    tpu.vector_store %arg10[%c0_2, %c0_3], %1 {strides = array<i32>} : memref<8x512xf32, #tpu.memory_space<vmem>>, vector<8x256xf32>,
    %c1 = arith.constant 1 : index
    %c0_4 = arith.constant 0 : index
    %c0_5 = arith.constant 0 : index
    %3 = vector.load %arg1[%c1, %c0_4, %c0_5] : memref<2x8x256xf32, #tpu.memory_space<vmem>>, vector<1x8x256xf32>
    %4 = vector.shape_cast %3 : vector<1x8x256xf32> to vector<8x256xf32>
    %c0_6 = arith.constant 0 : index
    %c256 = arith.constant 256 : index
    %5 = vector.load %arg10[%c0_6, %c256] : memref<8x512xf32, #tpu.memory_space<vmem>>, vector<8x256xf32>
    tpu.vector_store %arg10[%c0_6, %c256], %4 {strides = array<i32>} : memref<8x512xf32, #tpu.memory_space<vmem>>, vector<8x256xf32>,
    %c0_7 = arith.constant 0 : index
    %c0_8 = arith.constant 0 : index
    %6 = vector.load %arg10[%c0_7, %c0_8] : memref<8x512xf32, #tpu.memory_space<vmem>>, vector<8x512xf32>
    %c17_i32 = arith.constant 17 : i32
    %7 = tpu.dynamic_rotate %6 by %c17_i32 dim 1 : vector<8x512xf32>, i32 -> vector<8x512xf32>
    %c0_9 = arith.constant 0 : index
    %c0_10 = arith.constant 0 : index
    %8 = vector.load %arg2[%c0_9, %c0_10] : memref<72x512xf32, #tpu.memory_space<vmem>>, vector<8x512xf32>
    %9 = arith.mulf %7, %8 : vector<8x512xf32>
    %c0_11 = arith.constant 0 : index
    %c0_12 = arith.constant 0 : index
    %10 = vector.load %arg11[%c0_11, %c0_12] : memref<72x512xf32, #tpu.memory_space<vmem>>, vector<8x512xf32>
    tpu.vector_store %arg11[%c0_11, %c0_12], %9 {strides = array<i32>} : memref<72x512xf32, #tpu.memory_space<vmem>>, vector<8x512xf32>,
    %c16_i32 = arith.constant 16 : i32
    %11 = tpu.dynamic_rotate %6 by %c16_i32 dim 1 : vector<8x512xf32>, i32 -> vector<8x512xf32>
    %c8 = arith.constant 8 : index
    %c0_13 = arith.constant 0 : index
    %12 = vector.load %arg2[%c8, %c0_13] : memref<72x512xf32, #tpu.memory_space<vmem>>, vector<8x512xf32>
    %13 = arith.mulf %11, %12 : vector<8x512xf32>
    %c8_14 = arith.constant 8 : index
    %c0_15 = arith.constant 0 : index
    %14 = vector.load %arg11[%c8_14, %c0_15] : memref<72x512xf32, #tpu.memory_space<vmem>>, vector<8x512xf32>
    tpu.vector_store %arg11[%c8_14, %c0_15], %13 {strides = array<i32>} : memref<72x512xf32, #tpu.memory_space<vmem>>, vector<8x512xf32>,
    %c15_i32 = arith.constant 15 : i32
    %15 = tpu.dynamic_rotate %6 by %c15_i32 dim 1 : vector<8x512xf32>, i32 -> vector<8x512xf32>
    %c16 = arith.constant 16 : index
    %c0_16 = arith.constant 0 : index
    %16 = vector.load %arg2[%c16, %c0_16] : memref<72x512xf32, #tpu.memory_space<vmem>>, vector<8x512xf32>
    %17 = arith.mulf %15, %16 : vector<8x512xf32>
    %c16_17 = arith.constant 16 : index
    %c0_18 = arith.constant 0 : index
    %18 = vector.load %arg11[%c16_17, %c0_18] : memref<72x512xf32, #tpu.memory_space<vmem>>, vector<8x512xf32>
    tpu.vector_store %arg11[%c16_17, %c0_18], %17 {strides = array<i32>} : memref<72x512xf32, #tpu.memory_space<vmem>>, vector<8x512xf32>,
    %c1_i32 = arith.constant 1 : i32
    %19 = tpu.dynamic_rotate %6 by %c1_i32 dim 1 : vector<8x512xf32>, i32 -> vector<8x512xf32>
    %c24 = arith.constant 24 : index
    %c0_19 = arith.constant 0 : index
    %20 = vector.load %arg2[%c24, %c0_19] : memref<72x512xf32, #tpu.memory_space<vmem>>, vector<8x512xf32>
    %21 = arith.mulf %19, %20 : vector<8x512xf32>
    %c24_20 = arith.constant 24 : index
    %c0_21 = arith.constant 0 : index
    %22 = vector.load %arg11[%c24_20, %c0_21] : memref<72x512xf32, #tpu.memory_space<vmem>>, vector<8x512xf32>
    tpu.vector_store %arg11[%c24_20, %c0_21], %21 {strides = array<i32>} : memref<72x512xf32, #tpu.memory_space<vmem>>, vector<8x512xf32>,
    %c32 = arith.constant 32 : index
    %c0_22 = arith.constant 0 : index
    %23 = vector.load %arg11[%c32, %c0_22] : memref<72x512xf32, #tpu.memory_space<vmem>>, vector<8x512xf32>
    tpu.vector_store %arg11[%c32, %c0_22], %6 {strides = array<i32>} : memref<72x512xf32, #tpu.memory_space<vmem>>, vector<8x512xf32>,
    %c511_i32 = arith.constant 511 : i32
    %24 = tpu.dynamic_rotate %6 by %c511_i32 dim 1 : vector<8x512xf32>, i32 -> vector<8x512xf32>
    %c40 = arith.constant 40 : index
    %c0_23 = arith.constant 0 : index
    %25 = vector.load %arg2[%c40, %c0_23] : memref<72x512xf32, #tpu.memory_space<vmem>>, vector<8x512xf32>
    %26 = arith.mulf %24, %25 : vector<8x512xf32>
    %c40_24 = arith.constant 40 : index
    %c0_25 = arith.constant 0 : index
    %27 = vector.load %arg11[%c40_24, %c0_25] : memref<72x512xf32, #tpu.memory_space<vmem>>, vector<8x512xf32>
    tpu.vector_store %arg11[%c40_24, %c0_25], %26 {strides = array<i32>} : memref<72x512xf32, #tpu.memory_space<vmem>>, vector<8x512xf32>,
    %c497_i32 = arith.constant 497 : i32
    %28 = tpu.dynamic_rotate %6 by %c497_i32 dim 1 : vector<8x512xf32>, i32 -> vector<8x512xf32>
    %c48 = arith.constant 48 : index
    %c0_26 = arith.constant 0 : index
    %29 = vector.load %arg2[%c48, %c0_26] : memref<72x512xf32, #tpu.memory_space<vmem>>, vector<8x512xf32>
    %30 = arith.mulf %28, %29 : vector<8x512xf32>
    %c48_27 = arith.constant 48 : index
    %c0_28 = arith.constant 0 : index
    %31 = vector.load %arg11[%c48_27, %c0_28] : memref<72x512xf32, #tpu.memory_space<vmem>>, vector<8x512xf32>
    tpu.vector_store %arg11[%c48_27, %c0_28], %30 {strides = array<i32>} : memref<72x512xf32, #tpu.memory_space<vmem>>, vector<8x512xf32>,
    %c496_i32 = arith.constant 496 : i32
    %32 = tpu.dynamic_rotate %6 by %c496_i32 dim 1 : vector<8x512xf32>, i32 -> vector<8x512xf32>
    %c56 = arith.constant 56 : index
    %c0_29 = arith.constant 0 : index
    %33 = vector.load %arg2[%c56, %c0_29] : memref<72x512xf32, #tpu.memory_space<vmem>>, vector<8x512xf32>
    %34 = arith.mulf %32, %33 : vector<8x512xf32>
    %c56_30 = arith.constant 56 : index
    %c0_31 = arith.constant 0 : index
    %35 = vector.load %arg11[%c56_30, %c0_31] : memref<72x512xf32, #tpu.memory_space<vmem>>, vector<8x512xf32>
    tpu.vector_store %arg11[%c56_30, %c0_31], %34 {strides = array<i32>} : memref<72x512xf32, #tpu.memory_space<vmem>>, vector<8x512xf32>,
    %c495_i32 = arith.constant 495 : i32
    %36 = tpu.dynamic_rotate %6 by %c495_i32 dim 1 : vector<8x512xf32>, i32 -> vector<8x512xf32>
    %c64 = arith.constant 64 : index
    %c0_32 = arith.constant 0 : index
    %37 = vector.load %arg2[%c64, %c0_32] : memref<72x512xf32, #tpu.memory_space<vmem>>, vector<8x512xf32>
    %38 = arith.mulf %36, %37 : vector<8x512xf32>
    %c64_33 = arith.constant 64 : index
    %c0_34 = arith.constant 0 : index
    %39 = vector.load %arg11[%c64_33, %c0_34] : memref<72x512xf32, #tpu.memory_space<vmem>>, vector<8x512xf32>
    tpu.vector_store %arg11[%c64_33, %c0_34], %38 {strides = array<i32>} : memref<72x512xf32, #tpu.memory_space<vmem>>, vector<8x512xf32>,
    %c0_35 = arith.constant 0 : index
    %c0_36 = arith.constant 0 : index
    %40 = vector.load %arg3[%c0_35, %c0_36] : memref<8x72xf32, #tpu.memory_space<vmem>>, vector<8x72xf32>
    %c0_37 = arith.constant 0 : index
    %c0_38 = arith.constant 0 : index
    %41 = vector.load %arg11[%c0_37, %c0_38] : memref<72x512xf32, #tpu.memory_space<vmem>>, vector<72x512xf32>
    %cst = arith.constant dense<0.000000e+00> : vector<8x512xf32>
    %42 = tpu.matmul %40, %41, %cst {dimension_numbers = #tpu.dot_dimension_numbers<[1], [0], [0], [1], [0, 0, 1, 1], [], []>} : vector<8x72xf32>, vector<72x512xf32>, vector<8x512xf32> -> vector<8x512xf32>
    %c0_39 = arith.constant 0 : index
    %c0_40 = arith.constant 0 : index
    %43 = vector.load %arg4[%c0_39, %c0_40] : memref<8x1xf32, #tpu.memory_space<vmem>>, vector<8x1xf32>
    %44 = vector.broadcast %43 : vector<8x1xf32> to vector<8x512xf32>
    %45 = arith.addf %42, %44 : vector<8x512xf32>
    %cst_41 = arith.constant 0.000000e+00 : f32
    %46 = vector.broadcast %cst_41 : f32 to vector<8x512xf32>
    %47 = arith.maximumf %45, %46 : vector<8x512xf32>
    %c17_i32_42 = arith.constant 17 : i32
    %48 = tpu.dynamic_rotate %47 by %c17_i32_42 dim 1 : vector<8x512xf32>, i32 -> vector<8x512xf32>
    %c0_43 = arith.constant 0 : index
    %c0_44 = arith.constant 0 : index
    %49 = vector.load %arg2[%c0_43, %c0_44] : memref<72x512xf32, #tpu.memory_space<vmem>>, vector<8x512xf32>
    %50 = arith.mulf %48, %49 : vector<8x512xf32>
    %c0_45 = arith.constant 0 : index
    %c0_46 = arith.constant 0 : index
    %51 = vector.load %arg11[%c0_45, %c0_46] : memref<72x512xf32, #tpu.memory_space<vmem>>, vector<8x512xf32>
    tpu.vector_store %arg11[%c0_45, %c0_46], %50 {strides = array<i32>} : memref<72x512xf32, #tpu.memory_space<vmem>>, vector<8x512xf32>,
    %c16_i32_47 = arith.constant 16 : i32
    %52 = tpu.dynamic_rotate %47 by %c16_i32_47 dim 1 : vector<8x512xf32>, i32 -> vector<8x512xf32>
    %c8_48 = arith.constant 8 : index
    %c0_49 = arith.constant 0 : index
    %53 = vector.load %arg2[%c8_48, %c0_49] : memref<72x512xf32, #tpu.memory_space<vmem>>, vector<8x512xf32>
    %54 = arith.mulf %52, %53 : vector<8x512xf32>
    %c8_50 = arith.constant 8 : index
    %c0_51 = arith.constant 0 : index
    %55 = vector.load %arg11[%c8_50, %c0_51] : memref<72x512xf32, #tpu.memory_space<vmem>>, vector<8x512xf32>
    tpu.vector_store %arg11[%c8_50, %c0_51], %54 {strides = array<i32>} : memref<72x512xf32, #tpu.memory_space<vmem>>, vector<8x512xf32>,
    %c15_i32_52 = arith.constant 15 : i32
    %56 = tpu.dynamic_rotate %47 by %c15_i32_52 dim 1 : vector<8x512xf32>, i32 -> vector<8x512xf32>
    %c16_53 = arith.constant 16 : index
    %c0_54 = arith.constant 0 : index
    %57 = vector.load %arg2[%c16_53, %c0_54] : memref<72x512xf32, #tpu.memory_space<vmem>>, vector<8x512xf32>
    %58 = arith.mulf %56, %57 : vector<8x512xf32>
    %c16_55 = arith.constant 16 : index
    %c0_56 = arith.constant 0 : index
    %59 = vector.load %arg11[%c16_55, %c0_56] : memref<72x512xf32, #tpu.memory_space<vmem>>, vector<8x512xf32>
    tpu.vector_store %arg11[%c16_55, %c0_56], %58 {strides = array<i32>} : memref<72x512xf32, #tpu.memory_space<vmem>>, vector<8x512xf32>,
    %c1_i32_57 = arith.constant 1 : i32
    %60 = tpu.dynamic_rotate %47 by %c1_i32_57 dim 1 : vector<8x512xf32>, i32 -> vector<8x512xf32>
    %c24_58 = arith.constant 24 : index
    %c0_59 = arith.constant 0 : index
    %61 = vector.load %arg2[%c24_58, %c0_59] : memref<72x512xf32, #tpu.memory_space<vmem>>, vector<8x512xf32>
    %62 = arith.mulf %60, %61 : vector<8x512xf32>
    %c24_60 = arith.constant 24 : index
    %c0_61 = arith.constant 0 : index
    %63 = vector.load %arg11[%c24_60, %c0_61] : memref<72x512xf32, #tpu.memory_space<vmem>>, vector<8x512xf32>
    tpu.vector_store %arg11[%c24_60, %c0_61], %62 {strides = array<i32>} : memref<72x512xf32, #tpu.memory_space<vmem>>, vector<8x512xf32>,
    %c32_62 = arith.constant 32 : index
    %c0_63 = arith.constant 0 : index
    %64 = vector.load %arg11[%c32_62, %c0_63] : memref<72x512xf32, #tpu.memory_space<vmem>>, vector<8x512xf32>
    tpu.vector_store %arg11[%c32_62, %c0_63], %47 {strides = array<i32>} : memref<72x512xf32, #tpu.memory_space<vmem>>, vector<8x512xf32>,
    %c511_i32_64 = arith.constant 511 : i32
    %65 = tpu.dynamic_rotate %47 by %c511_i32_64 dim 1 : vector<8x512xf32>, i32 -> vector<8x512xf32>
    %c40_65 = arith.constant 40 : index
    %c0_66 = arith.constant 0 : index
    %66 = vector.load %arg2[%c40_65, %c0_66] : memref<72x512xf32, #tpu.memory_space<vmem>>, vector<8x512xf32>
    %67 = arith.mulf %65, %66 : vector<8x512xf32>
    %c40_67 = arith.constant 40 : index
    %c0_68 = arith.constant 0 : index
    %68 = vector.load %arg11[%c40_67, %c0_68] : memref<72x512xf32, #tpu.memory_space<vmem>>, vector<8x512xf32>
    tpu.vector_store %arg11[%c40_67, %c0_68], %67 {strides = array<i32>} : memref<72x512xf32, #tpu.memory_space<vmem>>, vector<8x512xf32>,
    %c497_i32_69 = arith.constant 497 : i32
    %69 = tpu.dynamic_rotate %47 by %c497_i32_69 dim 1 : vector<8x512xf32>, i32 -> vector<8x512xf32>
    %c48_70 = arith.constant 48 : index
    %c0_71 = arith.constant 0 : index
    %70 = vector.load %arg2[%c48_70, %c0_71] : memref<72x512xf32, #tpu.memory_space<vmem>>, vector<8x512xf32>
    %71 = arith.mulf %69, %70 : vector<8x512xf32>
    %c48_72 = arith.constant 48 : index
    %c0_73 = arith.constant 0 : index
    %72 = vector.load %arg11[%c48_72, %c0_73] : memref<72x512xf32, #tpu.memory_space<vmem>>, vector<8x512xf32>
    tpu.vector_store %arg11[%c48_72, %c0_73], %71 {strides = array<i32>} : memref<72x512xf32, #tpu.memory_space<vmem>>, vector<8x512xf32>,
    %c496_i32_74 = arith.constant 496 : i32
    %73 = tpu.dynamic_rotate %47 by %c496_i32_74 dim 1 : vector<8x512xf32>, i32 -> vector<8x512xf32>
    %c56_75 = arith.constant 56 : index
    %c0_76 = arith.constant 0 : index
    %74 = vector.load %arg2[%c56_75, %c0_76] : memref<72x512xf32, #tpu.memory_space<vmem>>, vector<8x512xf32>
    %75 = arith.mulf %73, %74 : vector<8x512xf32>
    %c56_77 = arith.constant 56 : index
    %c0_78 = arith.constant 0 : index
    %76 = vector.load %arg11[%c56_77, %c0_78] : memref<72x512xf32, #tpu.memory_space<vmem>>, vector<8x512xf32>
    tpu.vector_store %arg11[%c56_77, %c0_78], %75 {strides = array<i32>} : memref<72x512xf32, #tpu.memory_space<vmem>>, vector<8x512xf32>,
    %c495_i32_79 = arith.constant 495 : i32
    %77 = tpu.dynamic_rotate %47 by %c495_i32_79 dim 1 : vector<8x512xf32>, i32 -> vector<8x512xf32>
    %c64_80 = arith.constant 64 : index
    %c0_81 = arith.constant 0 : index
    %78 = vector.load %arg2[%c64_80, %c0_81] : memref<72x512xf32, #tpu.memory_space<vmem>>, vector<8x512xf32>
    %79 = arith.mulf %77, %78 : vector<8x512xf32>
    %c64_82 = arith.constant 64 : index
    %c0_83 = arith.constant 0 : index
    %80 = vector.load %arg11[%c64_82, %c0_83] : memref<72x512xf32, #tpu.memory_space<vmem>>, vector<8x512xf32>
    tpu.vector_store %arg11[%c64_82, %c0_83], %79 {strides = array<i32>} : memref<72x512xf32, #tpu.memory_space<vmem>>, vector<8x512xf32>,
    %c0_84 = arith.constant 0 : index
    %c0_85 = arith.constant 0 : index
    %81 = vector.load %arg5[%c0_84, %c0_85] : memref<8x72xf32, #tpu.memory_space<vmem>>, vector<8x72xf32>
    %c0_86 = arith.constant 0 : index
    %c0_87 = arith.constant 0 : index
    %82 = vector.load %arg11[%c0_86, %c0_87] : memref<72x512xf32, #tpu.memory_space<vmem>>, vector<72x512xf32>
    %cst_88 = arith.constant dense<0.000000e+00> : vector<8x512xf32>
    %83 = tpu.matmul %81, %82, %cst_88 {dimension_numbers = #tpu.dot_dimension_numbers<[1], [0], [0], [1], [0, 0, 1, 1], [], []>} : vector<8x72xf32>, vector<72x512xf32>, vector<8x512xf32> -> vector<8x512xf32>
    %c0_89 = arith.constant 0 : index
    %c0_90 = arith.constant 0 : index
    %84 = vector.load %arg6[%c0_89, %c0_90] : memref<8x1xf32, #tpu.memory_space<vmem>>, vector<8x1xf32>
    %85 = vector.broadcast %84 : vector<8x1xf32> to vector<8x512xf32>
    %86 = arith.addf %83, %85 : vector<8x512xf32>
    %cst_91 = arith.constant 0.000000e+00 : f32
    %87 = vector.broadcast %cst_91 : f32 to vector<8x512xf32>
    %88 = arith.maximumf %86, %87 : vector<8x512xf32>
    %c17_i32_92 = arith.constant 17 : i32
    %89 = tpu.dynamic_rotate %88 by %c17_i32_92 dim 1 : vector<8x512xf32>, i32 -> vector<8x512xf32>
    %c0_93 = arith.constant 0 : index
    %c0_94 = arith.constant 0 : index
    %90 = vector.load %arg2[%c0_93, %c0_94] : memref<72x512xf32, #tpu.memory_space<vmem>>, vector<8x512xf32>
    %91 = arith.mulf %89, %90 : vector<8x512xf32>
    %c0_95 = arith.constant 0 : index
    %c0_96 = arith.constant 0 : index
    %92 = vector.load %arg11[%c0_95, %c0_96] : memref<72x512xf32, #tpu.memory_space<vmem>>, vector<8x512xf32>
    tpu.vector_store %arg11[%c0_95, %c0_96], %91 {strides = array<i32>} : memref<72x512xf32, #tpu.memory_space<vmem>>, vector<8x512xf32>,
    %c16_i32_97 = arith.constant 16 : i32
    %93 = tpu.dynamic_rotate %88 by %c16_i32_97 dim 1 : vector<8x512xf32>, i32 -> vector<8x512xf32>
    %c8_98 = arith.constant 8 : index
    %c0_99 = arith.constant 0 : index
    %94 = vector.load %arg2[%c8_98, %c0_99] : memref<72x512xf32, #tpu.memory_space<vmem>>, vector<8x512xf32>
    %95 = arith.mulf %93, %94 : vector<8x512xf32>
    %c8_100 = arith.constant 8 : index
    %c0_101 = arith.constant 0 : index
    %96 = vector.load %arg11[%c8_100, %c0_101] : memref<72x512xf32, #tpu.memory_space<vmem>>, vector<8x512xf32>
    tpu.vector_store %arg11[%c8_100, %c0_101], %95 {strides = array<i32>} : memref<72x512xf32, #tpu.memory_space<vmem>>, vector<8x512xf32>,
    %c15_i32_102 = arith.constant 15 : i32
    %97 = tpu.dynamic_rotate %88 by %c15_i32_102 dim 1 : vector<8x512xf32>, i32 -> vector<8x512xf32>
    %c16_103 = arith.constant 16 : index
    %c0_104 = arith.constant 0 : index
    %98 = vector.load %arg2[%c16_103, %c0_104] : memref<72x512xf32, #tpu.memory_space<vmem>>, vector<8x512xf32>
    %99 = arith.mulf %97, %98 : vector<8x512xf32>
    %c16_105 = arith.constant 16 : index
    %c0_106 = arith.constant 0 : index
    %100 = vector.load %arg11[%c16_105, %c0_106] : memref<72x512xf32, #tpu.memory_space<vmem>>, vector<8x512xf32>
    tpu.vector_store %arg11[%c16_105, %c0_106], %99 {strides = array<i32>} : memref<72x512xf32, #tpu.memory_space<vmem>>, vector<8x512xf32>,
    %c1_i32_107 = arith.constant 1 : i32
    %101 = tpu.dynamic_rotate %88 by %c1_i32_107 dim 1 : vector<8x512xf32>, i32 -> vector<8x512xf32>
    %c24_108 = arith.constant 24 : index
    %c0_109 = arith.constant 0 : index
    %102 = vector.load %arg2[%c24_108, %c0_109] : memref<72x512xf32, #tpu.memory_space<vmem>>, vector<8x512xf32>
    %103 = arith.mulf %101, %102 : vector<8x512xf32>
    %c24_110 = arith.constant 24 : index
    %c0_111 = arith.constant 0 : index
    %104 = vector.load %arg11[%c24_110, %c0_111] : memref<72x512xf32, #tpu.memory_space<vmem>>, vector<8x512xf32>
    tpu.vector_store %arg11[%c24_110, %c0_111], %103 {strides = array<i32>} : memref<72x512xf32, #tpu.memory_space<vmem>>, vector<8x512xf32>,
    %c32_112 = arith.constant 32 : index
    %c0_113 = arith.constant 0 : index
    %105 = vector.load %arg11[%c32_112, %c0_113] : memref<72x512xf32, #tpu.memory_space<vmem>>, vector<8x512xf32>
    tpu.vector_store %arg11[%c32_112, %c0_113], %88 {strides = array<i32>} : memref<72x512xf32, #tpu.memory_space<vmem>>, vector<8x512xf32>,
    %c511_i32_114 = arith.constant 511 : i32
    %106 = tpu.dynamic_rotate %88 by %c511_i32_114 dim 1 : vector<8x512xf32>, i32 -> vector<8x512xf32>
    %c40_115 = arith.constant 40 : index
    %c0_116 = arith.constant 0 : index
    %107 = vector.load %arg2[%c40_115, %c0_116] : memref<72x512xf32, #tpu.memory_space<vmem>>, vector<8x512xf32>
    %108 = arith.mulf %106, %107 : vector<8x512xf32>
    %c40_117 = arith.constant 40 : index
    %c0_118 = arith.constant 0 : index
    %109 = vector.load %arg11[%c40_117, %c0_118] : memref<72x512xf32, #tpu.memory_space<vmem>>, vector<8x512xf32>
    tpu.vector_store %arg11[%c40_117, %c0_118], %108 {strides = array<i32>} : memref<72x512xf32, #tpu.memory_space<vmem>>, vector<8x512xf32>,
    %c497_i32_119 = arith.constant 497 : i32
    %110 = tpu.dynamic_rotate %88 by %c497_i32_119 dim 1 : vector<8x512xf32>, i32 -> vector<8x512xf32>
    %c48_120 = arith.constant 48 : index
    %c0_121 = arith.constant 0 : index
    %111 = vector.load %arg2[%c48_120, %c0_121] : memref<72x512xf32, #tpu.memory_space<vmem>>, vector<8x512xf32>
    %112 = arith.mulf %110, %111 : vector<8x512xf32>
    %c48_122 = arith.constant 48 : index
    %c0_123 = arith.constant 0 : index
    %113 = vector.load %arg11[%c48_122, %c0_123] : memref<72x512xf32, #tpu.memory_space<vmem>>, vector<8x512xf32>
    tpu.vector_store %arg11[%c48_122, %c0_123], %112 {strides = array<i32>} : memref<72x512xf32, #tpu.memory_space<vmem>>, vector<8x512xf32>,
    %c496_i32_124 = arith.constant 496 : i32
    %114 = tpu.dynamic_rotate %88 by %c496_i32_124 dim 1 : vector<8x512xf32>, i32 -> vector<8x512xf32>
    %c56_125 = arith.constant 56 : index
    %c0_126 = arith.constant 0 : index
    %115 = vector.load %arg2[%c56_125, %c0_126] : memref<72x512xf32, #tpu.memory_space<vmem>>, vector<8x512xf32>
    %116 = arith.mulf %114, %115 : vector<8x512xf32>
    %c56_127 = arith.constant 56 : index
    %c0_128 = arith.constant 0 : index
    %117 = vector.load %arg11[%c56_127, %c0_128] : memref<72x512xf32, #tpu.memory_space<vmem>>, vector<8x512xf32>
    tpu.vector_store %arg11[%c56_127, %c0_128], %116 {strides = array<i32>} : memref<72x512xf32, #tpu.memory_space<vmem>>, vector<8x512xf32>,
    %c495_i32_129 = arith.constant 495 : i32
    %118 = tpu.dynamic_rotate %88 by %c495_i32_129 dim 1 : vector<8x512xf32>, i32 -> vector<8x512xf32>
    %c64_130 = arith.constant 64 : index
    %c0_131 = arith.constant 0 : index
    %119 = vector.load %arg2[%c64_130, %c0_131] : memref<72x512xf32, #tpu.memory_space<vmem>>, vector<8x512xf32>
    %120 = arith.mulf %118, %119 : vector<8x512xf32>
    %c64_132 = arith.constant 64 : index
    %c0_133 = arith.constant 0 : index
    %121 = vector.load %arg11[%c64_132, %c0_133] : memref<72x512xf32, #tpu.memory_space<vmem>>, vector<8x512xf32>
    tpu.vector_store %arg11[%c64_132, %c0_133], %120 {strides = array<i32>} : memref<72x512xf32, #tpu.memory_space<vmem>>, vector<8x512xf32>,
    %c0_134 = arith.constant 0 : index
    %c0_135 = arith.constant 0 : index
    %122 = vector.load %arg7[%c0_134, %c0_135] : memref<8x72xf32, #tpu.memory_space<vmem>>, vector<8x72xf32>
    %c0_136 = arith.constant 0 : index
    %c0_137 = arith.constant 0 : index
    %123 = vector.load %arg11[%c0_136, %c0_137] : memref<72x512xf32, #tpu.memory_space<vmem>>, vector<72x512xf32>
    %cst_138 = arith.constant dense<0.000000e+00> : vector<8x512xf32>
    %124 = tpu.matmul %122, %123, %cst_138 {dimension_numbers = #tpu.dot_dimension_numbers<[1], [0], [0], [1], [0, 0, 1, 1], [], []>} : vector<8x72xf32>, vector<72x512xf32>, vector<8x512xf32> -> vector<8x512xf32>
    %c0_139 = arith.constant 0 : index
    %c0_140 = arith.constant 0 : index
    %125 = vector.load %arg8[%c0_139, %c0_140] : memref<8x1xf32, #tpu.memory_space<vmem>>, vector<8x1xf32>
    %126 = vector.broadcast %125 : vector<8x1xf32> to vector<8x512xf32>
    %127 = arith.addf %124, %126 : vector<8x512xf32>
    %cst_141 = arith.constant 0.000000e+00 : f32
    %128 = vector.broadcast %cst_141 : f32 to vector<8x512xf32>
    %129 = arith.maximumf %127, %128 : vector<8x512xf32>
    %130 = vector.extract_strided_slice %129 {offsets = [0, 0], sizes = [8, 256], strides = [1, 1]} : vector<8x512xf32> to vector<8x256xf32>
    %c0_142 = arith.constant 0 : index
    %c0_143 = arith.constant 0 : index
    %c0_144 = arith.constant 0 : index
    %131 = vector.load %arg9[%c0_142, %c0_143, %c0_144] : memref<2x8x256xf32, #tpu.memory_space<vmem>>, vector<1x8x256xf32>
    %132 = vector.shape_cast %131 : vector<1x8x256xf32> to vector<8x256xf32>
    %133 = vector.shape_cast %130 : vector<8x256xf32> to vector<1x8x256xf32>
    tpu.vector_store %arg9[%c0_142, %c0_143, %c0_144], %133 {strides = array<i32>} : memref<2x8x256xf32, #tpu.memory_space<vmem>>, vector<1x8x256xf32>,
    %134 = vector.extract_strided_slice %129 {offsets = [0, 256], sizes = [8, 256], strides = [1, 1]} : vector<8x512xf32> to vector<8x256xf32>
    %c1_145 = arith.constant 1 : index
    %c0_146 = arith.constant 0 : index
    %c0_147 = arith.constant 0 : index
    %135 = vector.load %arg9[%c1_145, %c0_146, %c0_147] : memref<2x8x256xf32, #tpu.memory_space<vmem>>, vector<1x8x256xf32>
    %136 = vector.shape_cast %135 : vector<1x8x256xf32> to vector<8x256xf32>
    %137 = vector.shape_cast %134 : vector<8x256xf32> to vector<1x8x256xf32>
    tpu.vector_store %arg9[%c1_145, %c0_146, %c0_147], %137 {strides = array<i32>} : memref<2x8x256xf32, #tpu.memory_space<vmem>>, vector<1x8x256xf32>,
    return
  }
  func.func @transform_0(%arg0: i32) -> (i32, i32, i32) {
    %c0_i32 = arith.constant 0 : i32
    %c0_i32_0 = arith.constant 0 : i32
    %c0_i32_1 = arith.constant 0 : i32
    return %arg0, %c0_i32, %c0_i32_0 : i32, i32, i32
  }
  func.func @transform_1(%arg0: i32) -> (i32, i32) {
    %c0_i32 = arith.constant 0 : i32
    %c0_i32_0 = arith.constant 0 : i32
    %c0_i32_1 = arith.constant 0 : i32
    return %c0_i32, %c0_i32_0 : i32, i32
  }
  func.func @transform_2(%arg0: i32) -> (i32, i32) {
    %c0_i32 = arith.constant 0 : i32
    %c0_i32_0 = arith.constant 0 : i32
    %c0_i32_1 = arith.constant 0 : i32
    return %c0_i32, %c0_i32_0 : i32, i32
  }
  func.func @transform_3(%arg0: i32) -> (i32, i32) {
    %c0_i32 = arith.constant 0 : i32
    %c0_i32_0 = arith.constant 0 : i32
    %c0_i32_1 = arith.constant 0 : i32
    return %c0_i32, %c0_i32_0 : i32, i32
  }
  func.func @transform_4(%arg0: i32) -> (i32, i32) {
    %c0_i32 = arith.constant 0 : i32
    %c0_i32_0 = arith.constant 0 : i32
    %c0_i32_1 = arith.constant 0 : i32
    return %c0_i32, %c0_i32_0 : i32, i32
  }
  func.func @transform_5(%arg0: i32) -> (i32, i32) {
    %c0_i32 = arith.constant 0 : i32
    %c0_i32_0 = arith.constant 0 : i32
    %c0_i32_1 = arith.constant 0 : i32
    return %c0_i32, %c0_i32_0 : i32, i32
  }
  func.func @transform_6(%arg0: i32) -> (i32, i32) {
    %c0_i32 = arith.constant 0 : i32
    %c0_i32_0 = arith.constant 0 : i32
    %c0_i32_1 = arith.constant 0 : i32
    return %c0_i32, %c0_i32_0 : i32, i32
  }
  func.func @transform_7(%arg0: i32) -> (i32, i32) {
    %c0_i32 = arith.constant 0 : i32
    %c0_i32_0 = arith.constant 0 : i32
    %c0_i32_1 = arith.constant 0 : i32
    return %c0_i32, %c0_i32_0 : i32, i32
  }
  func.func @transform_8(%arg0: i32) -> (i32, i32, i32) {
    %c0_i32 = arith.constant 0 : i32
    %c0_i32_0 = arith.constant 0 : i32
    %c0_i32_1 = arith.constant 0 : i32
    return %arg0, %c0_i32, %c0_i32_0 : i32, i32, i32
  }
}

</mosaic_0001>

<llo_original>
// kernel: tpu_custom_call.1
$region0: #{tpu_custom_call.1}
  #allocation0 [shape = 'u32[]', space=smem, size = 0x4, offset = 0x4, fixed_abs, tag = 'smem constant byte address 0x4 - core index']
  #allocation1 [shape = 'u32[144,128]{1,0:T(1,128)}', space=vmem, size = 0x12000, scoped, tag = 'internal scratch']
  #allocation2 [shape = 'f32[8,512]{1,0:T(8,128)}', space=vmem, size = 0x4000, scoped, tag = 'scratch operand']
  #allocation3 [shape = 'f32[72,512]{1,0:T(8,128)}', space=vmem, size = 0x24000, scoped, tag = 'scratch operand']
  %s0 = inlined_call_operand.hbm [shape: f32[8,8,256], index: 0, kind: input, shape index: {}]
  %s1 = inlined_call_operand.hbm [shape: f32[72,512], index: 1, kind: input, shape index: {}]
  %s2 = inlined_call_operand.vmem [shape: f32[8,72], index: 2, kind: input, shape index: {}]
  %s3 = inlined_call_operand.vmem [shape: f32[8,1], index: 3, kind: input, shape index: {}]
  %s4 = inlined_call_operand.vmem [shape: f32[8,72], index: 4, kind: input, shape index: {}]
  %s5 = inlined_call_operand.vmem [shape: f32[8,1], index: 5, kind: input, shape index: {}]
  %s6 = inlined_call_operand.vmem [shape: f32[8,72], index: 6, kind: input, shape index: {}]
  %s7 = inlined_call_operand.vmem [shape: f32[8,1], index: 7, kind: input, shape index: {}]
  %s8 = inlined_call_operand.hbm [shape: f32[8,8,256], index: 8, kind: output, shape index: {}]
  %s9 = sld [smem:[#allocation0]]
  $region73: #{tpu_custom_call.1} parent=0
    _
  %s11 = ssub.s32 1, %s9
  %s12 = scalar_select 0, %s11, %s9
  $region1: #{tpu_custom_call.1} parent=0
    #allocation4 [shape = 'u8[32768]{0}', space=vmem, size = 0x8000, scoped, tag = 'input window, operand 0']
    #allocation5 [shape = 's32[2]{0}', space=sflag, size = 0x8, scoped, tag = 'scoped memory for tpu_custom_call.1']
    #allocation6 [shape = 's32[2]{0}', space=sflag, size = 0x8, scoped, tag = 'scoped memory for tpu_custom_call.1']
    #allocation7 [shape = 'u8[147456]{0}', space=vmem, size = 0x24000, scoped, tag = 'input window, operand 1, single buffered']
    #allocation8 [shape = 's32[1]{0}', space=sflag, size = 0x4, scoped, tag = 'scoped memory for tpu_custom_call.1']
    #allocation9 [shape = 'u8[32768]{0}', space=vmem, size = 0x8000, scoped, tag = 'output window, operand 0']
    %13 = vsyncpa [#allocation5], 0
    %s14 = scalar_lea.sflag [#allocation5], 1
    %15 = vsyncpa %s14, 0
    %16 = vsyncpa [#allocation8], 0
    %17 = vsyncpa [#allocation6], 0
    %s18 = scalar_lea.sflag [#allocation6], 1
    %19 = vsyncpa %s18, 0
    loop: start=0, step=1, limit=6
    $region2: #{tpu_custom_call.1} parent=1 // loop_pre_header
      _
    $region3: #{tpu_custom_call.1} parent=1 // loop_header
      %s21 = sphi 0, %s25
      %p22 = scmp.ge.s32.totalorder %s21, 6
      %s31 = sphi 0, %s33
      %s34 = sphi 0, %s31
      %s35 = sphi 0, %s34
      %s51 = sphi 0, %s35
      %s55 = sphi 0, %s55
      %s57 = sphi 0, %s55
      %s58 = sphi 0, %s57
      %s72 = sphi 0, %s58
      %s76 = sphi 0, %s76
      %s78 = sphi 0, %s76
      %s79 = sphi 0, %s78
      %s93 = sphi 0, %s79
      %s97 = sphi 0, %s97
      %s99 = sphi 0, %s97
      %s100 = sphi 0, %s99
      %s114 = sphi 0, %s100
      %s118 = sphi 0, %s118
      %s120 = sphi 0, %s118
      %s121 = sphi 0, %s120
      %s135 = sphi 0, %s121
      %s139 = sphi 0, %s139
      %s141 = sphi 0, %s139
      %s142 = sphi 0, %s141
      %s156 = sphi 0, %s142
      %s160 = sphi 0, %s160
      %s162 = sphi 0, %s160
      %s163 = sphi 0, %s162
      %s177 = sphi 0, %s163
      %s181 = sphi 0, %s181
      %s183 = sphi 0, %s181
      %s184 = sphi 0, %s183
      %s198 = sphi 0, %s184
      %s204 = sphi 0, %s206
      %s207 = sphi 0, %s204
      %s208 = sphi 0, %s207
      %s224 = sphi 0, %s208
    $region4: #{tpu_custom_call.1} parent=1 // loop_header_branch
      %24 = sbr.rel (%p22) target = $region8
    $region5: #{tpu_custom_call.1} parent=1 // loop_body
      %s26 = ssub.s32 %s21, 1
      %s27 = ssub.s32 %s21, 2
      %s28 = sadd.s32 %s21, 1
      %s29 = ssub.s32 %s21, %s28
      %p30 = scmp.eq.s32.totalorder %s29, 0
      %s32 = sadd.s32 %s31, 1
      %s33 = scalar_select %p30, %s31, %s32
      %p36 = pneg %p30
      %p37 = scmp.eq.s32.totalorder %s21, 3
      %p38 = por %p36, %p37
      %p39 = scmp.ne.s32.totalorder %s31, %s34
      %p40 = scmp.eq.s32.totalorder %s21, 0
      %p41 = por %p39, %p40
      %p42 = scmp.ne.s32.totalorder %s31, %s34
      %p43 = scmp.eq.s32.totalorder %s26, 3
      %p44 = por %p42, %p43
      %p45 = scmp.ne.s32.totalorder %s34, %s35
      %p46 = scmp.eq.s32.totalorder %s26, 0
      %p47 = por %p45, %p46
      %p48 = scmp.ne.s32.totalorder %s34, %s35
      %p49 = scmp.eq.s32.totalorder %s27, 3
      %p50 = por %p48, %p49
      %p52 = scmp.ne.s32.totalorder %s35, %s51
      %p53 = scmp.eq.s32.totalorder %s27, 0
      %p54 = por %p52, %p53
      %s56 = sadd.s32 %s55, 1
      %p59 = scmp.eq.s32.totalorder %s21, 3
      %p60 = scmp.ne.s32.totalorder %s55, %s57
      %p61 = scmp.eq.s32.totalorder %s21, 0
      %p62 = por %p60, %p61
      %p63 = scmp.ne.s32.totalorder %s55, %s57
      %p64 = scmp.eq.s32.totalorder %s26, 3
      %p65 = por %p63, %p64
      %p66 = scmp.ne.s32.totalorder %s57, %s58
      %p67 = scmp.eq.s32.totalorder %s26, 0
      %p68 = por %p66, %p67
      %p69 = scmp.ne.s32.totalorder %s57, %s58
      %p70 = scmp.eq.s32.totalorder %s27, 3
      %p71 = por %p69, %p70
      %p73 = scmp.ne.s32.totalorder %s58, %s72
      %p74 = scmp.eq.s32.totalorder %s27, 0
      %p75 = por %p73, %p74
      %s77 = sadd.s32 %s76, 1
      %p80 = scmp.eq.s32.totalorder %s21, 3
      %p81 = scmp.ne.s32.totalorder %s76, %s78
      %p82 = scmp.eq.s32.totalorder %s21, 0
      %p83 = por %p81, %p82
      %p84 = scmp.ne.s32.totalorder %s76, %s78
      %p85 = scmp.eq.s32.totalorder %s26, 3
      %p86 = por %p84, %p85
      %p87 = scmp.ne.s32.totalorder %s78, %s79
      %p88 = scmp.eq.s32.totalorder %s26, 0
      %p89 = por %p87, %p88
      %p90 = scmp.ne.s32.totalorder %s78, %s79
      %p91 = scmp.eq.s32.totalorder %s27, 3
      %p92 = por %p90, %p91
      %p94 = scmp.ne.s32.totalorder %s79, %s93
      %p95 = scmp.eq.s32.totalorder %s27, 0
      %p96 = por %p94, %p95
      %s98 = sadd.s32 %s97, 1
      %p101 = scmp.eq.s32.totalorder %s21, 3
      %p102 = scmp.ne.s32.totalorder %s97, %s99
      %p103 = scmp.eq.s32.totalorder %s21, 0
      %p104 = por %p102, %p103
      %p105 = scmp.ne.s32.totalorder %s97, %s99
      %p106 = scmp.eq.s32.totalorder %s26, 3
      %p107 = por %p105, %p106
      %p108 = scmp.ne.s32.totalorder %s99, %s100
      %p109 = scmp.eq.s32.totalorder %s26, 0
      %p110 = por %p108, %p109
      %p111 = scmp.ne.s32.totalorder %s99, %s100
      %p112 = scmp.eq.s32.totalorder %s27, 3
      %p113 = por %p111, %p112
      %p115 = scmp.ne.s32.totalorder %s100, %s114
      %p116 = scmp.eq.s32.totalorder %s27, 0
      %p117 = por %p115, %p116
      %s119 = sadd.s32 %s118, 1
      %p122 = scmp.eq.s32.totalorder %s21, 3
      %p123 = scmp.ne.s32.totalorder %s118, %s120
      %p124 = scmp.eq.s32.totalorder %s21, 0
      %p125 = por %p123, %p124
      %p126 = scmp.ne.s32.totalorder %s118, %s120
      %p127 = scmp.eq.s32.totalorder %s26, 3
      %p128 = por %p126, %p127
      %p129 = scmp.ne.s32.totalorder %s120, %s121
      %p130 = scmp.eq.s32.totalorder %s26, 0
      %p131 = por %p129, %p130
      %p132 = scmp.ne.s32.totalorder %s120, %s121
      %p133 = scmp.eq.s32.totalorder %s27, 3
      %p134 = por %p132, %p133
      %p136 = scmp.ne.s32.totalorder %s121, %s135
      %p137 = scmp.eq.s32.totalorder %s27, 0
      %p138 = por %p136, %p137
      %s140 = sadd.s32 %s139, 1
      %p143 = scmp.eq.s32.totalorder %s21, 3
      %p144 = scmp.ne.s32.totalorder %s139, %s141
      %p145 = scmp.eq.s32.totalorder %s21, 0
      %p146 = por %p144, %p145
      %p147 = scmp.ne.s32.totalorder %s139, %s141
      %p148 = scmp.eq.s32.totalorder %s26, 3
      %p149 = por %p147, %p148
      %p150 = scmp.ne.s32.totalorder %s141, %s142
      %p151 = scmp.eq.s32.totalorder %s26, 0
      %p152 = por %p150, %p151
      %p153 = scmp.ne.s32.totalorder %s141, %s142
      %p154 = scmp.eq.s32.totalorder %s27, 3
      %p155 = por %p153, %p154
      %p157 = scmp.ne.s32.totalorder %s142, %s156
      %p158 = scmp.eq.s32.totalorder %s27, 0
      %p159 = por %p157, %p158
      %s161 = sadd.s32 %s160, 1
      %p164 = scmp.eq.s32.totalorder %s21, 3
      %p165 = scmp.ne.s32.totalorder %s160, %s162
      %p166 = scmp.eq.s32.totalorder %s21, 0
      %p167 = por %p165, %p166
      %p168 = scmp.ne.s32.totalorder %s160, %s162
      %p169 = scmp.eq.s32.totalorder %s26, 3
      %p170 = por %p168, %p169
      %p171 = scmp.ne.s32.totalorder %s162, %s163
      %p172 = scmp.eq.s32.totalorder %s26, 0
      %p173 = por %p171, %p172
      %p174 = scmp.ne.s32.totalorder %s162, %s163
      %p175 = scmp.eq.s32.totalorder %s27, 3
      %p176 = por %p174, %p175
      %p178 = scmp.ne.s32.totalorder %s163, %s177
      %p179 = scmp.eq.s32.totalorder %s27, 0
      %p180 = por %p178, %p179
      %s182 = sadd.s32 %s181, 1
      %p185 = scmp.eq.s32.totalorder %s21, 3
      %p186 = scmp.ne.s32.totalorder %s181, %s183
      %p187 = scmp.eq.s32.totalorder %s21, 0
      %p188 = por %p186, %p187
      %p189 = scmp.ne.s32.totalorder %s181, %s183
      %p190 = scmp.eq.s32.totalorder %s26, 3
      %p191 = por %p189, %p190
      %p192 = scmp.ne.s32.totalorder %s183, %s184
      %p193 = scmp.eq.s32.totalorder %s26, 0
      %p194 = por %p192, %p193
      %p195 = scmp.ne.s32.totalorder %s183, %s184
      %p196 = scmp.eq.s32.totalorder %s27, 3
      %p197 = por %p195, %p196
      %p199 = scmp.ne.s32.totalorder %s184, %s198
      %p200 = scmp.eq.s32.totalorder %s27, 0
      %p201 = por %p199, %p200
      %s202 = ssub.s32 %s21, %s28
      %p203 = scmp.eq.s32.totalorder %s202, 0
      %s205 = sadd.s32 %s204, 1
      %s206 = scalar_select %p203, %s204, %s205
      %p209 = pneg %p203
      %p210 = scmp.eq.s32.totalorder %s21, 3
      %p211 = por %p209, %p210
      %p212 = scmp.ne.s32.totalorder %s204, %s207
      %p213 = scmp.eq.s32.totalorder %s21, 0
      %p214 = por %p212, %p213
      %p215 = scmp.ne.s32.totalorder %s204, %s207
      %p216 = scmp.eq.s32.totalorder %s26, 3
      %p217 = por %p215, %p216
      %p218 = scmp.ne.s32.totalorder %s207, %s208
      %p219 = scmp.eq.s32.totalorder %s26, 0
      %p220 = por %p218, %p219
      %p221 = scmp.ne.s32.totalorder %s207, %s208
      %p222 = scmp.eq.s32.totalorder %s27, 3
      %p223 = por %p221, %p222
      %p225 = scmp.ne.s32.totalorder %s208, %s224
      %p226 = scmp.eq.s32.totalorder %s27, 0
      %p227 = por %p225, %p226
      %p228 = scmp.le.s32.totalorder 1, %s21
      %p229 = scmp.lt.s32.totalorder %s21, 5
      %p230 = pnand %p228, %p229
      %p231 = pneg %p230
      // Predicated region
      $region9: #{tpu_custom_call.1} parent=5 // pred_check
        _
      $region10: #{tpu_custom_call.1} parent=5 // pred_check_branch
        %233 = sbr.rel (%p230) target = $region12
      $region11: #{tpu_custom_call.1} parent=5 // pred_region
        %s234 = ssub.s32 %s21, 1
        // Predicated region
        $region13: #{tpu_custom_call.1} parent=11 // pred_check
          %p235 = pneg %p68
        $region14: #{tpu_custom_call.1} parent=11 // pred_check_branch
          %237 = sbr.rel (%p235) target = $region16
        $region15: #{tpu_custom_call.1} parent=11 // pred_region
          %s239 = ssub.s32 4608, 4608
          %240 = vsyncadd [#allocation8], %s239
          %s241 = sshll.u32 [#allocation7], 4
          %s242 = int_to_ptr.vmem [resolvable:$true] %s241
          %247 = dma.hbm_to_vmem [thread:$0]  %s1, 4608, %s242, [#allocation8], 512, 512, 32
        $region16: #{tpu_custom_call.1} parent=11 // pred_fallthru
          _
        // Predicated region
        $region17: #{tpu_custom_call.1} parent=11 // pred_check
          %p248 = pneg %p89
        $region18: #{tpu_custom_call.1} parent=11 // pred_check_branch
          %250 = sbr.rel (%p248) target = $region20
        $region19: #{tpu_custom_call.1} parent=11 // pred_region
          _
        $region20: #{tpu_custom_call.1} parent=11 // pred_fallthru
          _
        // Predicated region
        $region21: #{tpu_custom_call.1} parent=11 // pred_check
          %p251 = pneg %p110
        $region22: #{tpu_custom_call.1} parent=11 // pred_check_branch
          %253 = sbr.rel (%p251) target = $region24
        $region23: #{tpu_custom_call.1} parent=11 // pred_region
          _
        $region24: #{tpu_custom_call.1} parent=11 // pred_fallthru
          _
        // Predicated region
        $region25: #{tpu_custom_call.1} parent=11 // pred_check
          %p254 = pneg %p131
        $region26: #{tpu_custom_call.1} parent=11 // pred_check_branch
          %256 = sbr.rel (%p254) target = $region28
        $region27: #{tpu_custom_call.1} parent=11 // pred_region
          _
        $region28: #{tpu_custom_call.1} parent=11 // pred_fallthru
          _
        // Predicated region
        $region29: #{tpu_custom_call.1} parent=11 // pred_check
          %p257 = pneg %p152
        $region30: #{tpu_custom_call.1} parent=11 // pred_check_branch
          %259 = sbr.rel (%p257) target = $region32
        $region31: #{tpu_custom_call.1} parent=11 // pred_region
          _
        $region32: #{tpu_custom_call.1} parent=11 // pred_fallthru
          _
        // Predicated region
        $region33: #{tpu_custom_call.1} parent=11 // pred_check
          %p260 = pneg %p173
        $region34: #{tpu_custom_call.1} parent=11 // pred_check_branch
          %262 = sbr.rel (%p260) target = $region36
        $region35: #{tpu_custom_call.1} parent=11 // pred_region
          _
        $region36: #{tpu_custom_call.1} parent=11 // pred_fallthru
          _
        // Predicated region
        $region37: #{tpu_custom_call.1} parent=11 // pred_check
          %p263 = pneg %p194
        $region38: #{tpu_custom_call.1} parent=11 // pred_check_branch
          %265 = sbr.rel (%p263) target = $region40
        $region39: #{tpu_custom_call.1} parent=11 // pred_region
          _
        $region40: #{tpu_custom_call.1} parent=11 // pred_fallthru
          _
      $region12: #{tpu_custom_call.1} parent=5 // pred_fallthru
        _
      %p266 = scmp.lt.s32.totalorder %s21, 4
      // Predicated region
      $region41: #{tpu_custom_call.1} parent=5 // pred_check
        %p267 = pneg %p266
      $region42: #{tpu_custom_call.1} parent=5 // pred_check_branch
        %269 = sbr.rel (%p267) target = $region44
      $region43: #{tpu_custom_call.1} parent=5 // pred_region
        // Predicated region
        $region45: #{tpu_custom_call.1} parent=43 // pred_check
          %p270 = pneg %p41
        $region46: #{tpu_custom_call.1} parent=43 // pred_check_branch
          %272 = sbr.rel (%p270) target = $region48
        $region47: #{tpu_custom_call.1} parent=43 // pred_region
          %s273 = sand.u32 %s31, 1
          %s274 = scalar_lea.sflag [#allocation5], %s273
          %s275 = sand.u32 %s31, 1
          %s276 = smul.addr %s275, 32
          %s277 = scalar_lea.vmem [#allocation4], %s276
          %s278 = smul.u32 2, %s21
          %s280 = ssub.s32 512, 512
          %281 = vsyncadd %s274, %s280
          %s282 = smul.addr %s278, 2
          %s283 = smul.addr %s282, 128
          %s284 = scalar_lea.hbm %s0, %s283
          %s285 = sshll.u32 %s277, 4
          %s286 = int_to_ptr.vmem [resolvable:$true] %s285
          %291 = dma.hbm_to_vmem [thread:$0]  %s284, 512, %s286, %s274, 256, 256, 16
        $region48: #{tpu_custom_call.1} parent=43 // pred_fallthru
          _
      $region44: #{tpu_custom_call.1} parent=5 // pred_fallthru
        _
      %p292 = scmp.le.s32.totalorder 1, %s21
      %p293 = scmp.lt.s32.totalorder %s21, 5
      %p294 = pnand %p292, %p293
      %p295 = pneg %p294
      // Predicated region
      $region49: #{tpu_custom_call.1} parent=5 // pred_check
        _
      $region50: #{tpu_custom_call.1} parent=5 // pred_check_branch
        %297 = sbr.rel (%p294) target = $region52
      $region51: #{tpu_custom_call.1} parent=5 // pred_region
        %s298 = ssub.s32 %s21, 1
        %s299 = sand.u32 %s34, 1
        %s300 = scalar_lea.sflag [#allocation5], %s299
        %s301 = sand.u32 %s34, 1
        %s302 = smul.addr %s301, 32
        %s303 = scalar_lea.vmem [#allocation4], %s302
        // Predicated region
        $region53: #{tpu_custom_call.1} parent=51 // pred_check
          %p304 = pneg %p47
        $region54: #{tpu_custom_call.1} parent=51 // pred_check_branch
          %306 = sbr.rel (%p304) target = $region56
        $region55: #{tpu_custom_call.1} parent=51 // pred_region
          %307 = dma.done %s300, 512
        $region56: #{tpu_custom_call.1} parent=51 // pred_fallthru
          _
        // Predicated region
        $region57: #{tpu_custom_call.1} parent=51 // pred_check
          %p308 = pneg %p68
        $region58: #{tpu_custom_call.1} parent=51 // pred_check_branch
          %310 = sbr.rel (%p308) target = $region60
        $region59: #{tpu_custom_call.1} parent=51 // pred_region
          %311 = dma.done [#allocation8], 4608
        $region60: #{tpu_custom_call.1} parent=51 // pred_fallthru
          _
        %s312 = sand.u32 %s34, 1
        %s313 = scalar_lea.sflag [#allocation5], %s312
        %s314 = sand.u32 %s34, 1
        %s315 = smul.addr %s314, 32
        %s316 = scalar_lea.vmem [#allocation4], %s315
        %p317 = pneg %p47
        %p318 = pneg %p44
        %p319 = pneg %p68
        %p320 = pneg %p65
        %p321 = pneg %p89
        %p322 = pneg %p86
        %p323 = pneg %p110
        %p324 = pneg %p107
        %p325 = pneg %p131
        %p326 = pneg %p128
        %p327 = pneg %p152
        %p328 = pneg %p149
        %p329 = pneg %p173
        %p330 = pneg %p170
        %p331 = pneg %p194
        %p332 = pneg %p191
        %p333 = pneg %p220
        %p334 = pneg %p217
        %s335 = sand.u32 %s207, 1
        %s336 = scalar_lea.sflag [#allocation6], %s335
        %s337 = sand.u32 %s207, 1
        %s338 = smul.addr %s337, 32
        %s339 = scalar_lea.vmem [#allocation9], %s338
        %s340 = smul.u32 2, %s26
        %s341 = smul.u32 2, %s26
        %v342 = vld [vmem:[%s303] sm:$0xff]
        %v343 = vld [vmem:[%s303 + $0x8] sm:$0xff]
        %344 = vst [vmem:[#allocation2] sm:$0xff] %v342
        %345 = vst [vmem:[#allocation2 + $0x8] sm:$0xff] %v343
        %s346 = scalar_lea.vmem %s303, 16 [#allocation4]
        %v347 = vld [vmem:[%s346] sm:$0xff]
        %v348 = vld [vmem:[%s346 + $0x8] sm:$0xff]
        %349 = vst [vmem:[#allocation2 + $0x10] sm:$0xff] %v347
        %350 = vst [vmem:[#allocation2 + $0x18] sm:$0xff] %v348
        %v351 = vld [vmem:[#allocation2] sm:$0xff]
        %v352 = vld [vmem:[#allocation2 + $0x8] sm:$0xff]
        %v353 = vld [vmem:[#allocation2 + $0x10] sm:$0xff]
        %v354 = vld [vmem:[#allocation2 + $0x18] sm:$0xff]
        %355 = vrot.lane.b32.xlu0 %v351, 17
        %v356 = vpop.permute.xlu0 %355
        %357 = vrot.lane.b32.xlu0 %v352, 17
        %v358 = vpop.permute.xlu0 %357
        %359 = vrot.lane.b32.xlu0 %v353, 17
        %v360 = vpop.permute.xlu0 %359
        %361 = vrot.lane.b32.xlu0 %v354, 17
        %v362 = vpop.permute.xlu0 %361
        %v363 = vlaneseq
        %v364 = vand.u32 %v363, 127
        %vm365 = vcmp.lt.s32.totalorder %v364, 17
        %v366 = vsel %vm365, %v360, %v362
        %v367 = vsel %vm365, %v358, %v360
        %v368 = vsel %vm365, %v356, %v358
        %v369 = vsel %vm365, %v362, %v356
        %v370 = vld [vmem:[#allocation7] sm:$0xff]
        %v371 = vld [vmem:[#allocation7 + $0x8] sm:$0xff]
        %v372 = vld [vmem:[#allocation7 + $0x10] sm:$0xff]
        %v373 = vld [vmem:[#allocation7 + $0x18] sm:$0xff]
        %v374 = vmul.f32 %v369, %v370
        %v375 = vmul.f32 %v368, %v371
        %v376 = vmul.f32 %v367, %v372
        %v377 = vmul.f32 %v366, %v373
        %378 = vst [vmem:[#allocation3] sm:$0xff] %v374
        %379 = vst [vmem:[#allocation3 + $0x8] sm:$0xff] %v375
        %380 = vst [vmem:[#allocation3 + $0x10] sm:$0xff] %v376
        %381 = vst [vmem:[#allocation3 + $0x18] sm:$0xff] %v377
        %382 = vrot.lane.b32.xlu0 %v351, 16
        %v383 = vpop.permute.xlu0 %382
        %384 = vrot.lane.b32.xlu0 %v352, 16
        %v385 = vpop.permute.xlu0 %384
        %386 = vrot.lane.b32.xlu0 %v353, 16
        %v387 = vpop.permute.xlu0 %386
        %388 = vrot.lane.b32.xlu0 %v354, 16
        %v389 = vpop.permute.xlu0 %388
        %vm390 = vcmp.lt.s32.totalorder %v364, 16
        %v391 = vsel %vm390, %v387, %v389
        %v392 = vsel %vm390, %v385, %v387
        %v393 = vsel %vm390, %v383, %v385
        %v394 = vsel %vm390, %v389, %v383
        %v395 = vld [vmem:[#allocation7 + $0x20] sm:$0xff]
        %v396 = vld [vmem:[#allocation7 + $0x28] sm:$0xff]
        %v397 = vld [vmem:[#allocation7 + $0x30] sm:$0xff]
        %v398 = vld [vmem:[#allocation7 + $0x38] sm:$0xff]
        %v399 = vmul.f32 %v394, %v395
        %v400 = vmul.f32 %v393, %v396
        %v401 = vmul.f32 %v392, %v397
        %v402 = vmul.f32 %v391, %v398
        %403 = vst [vmem:[#allocation3 + $0x20] sm:$0xff] %v399
        %404 = vst [vmem:[#allocation3 + $0x28] sm:$0xff] %v400
        %405 = vst [vmem:[#allocation3 + $0x30] sm:$0xff] %v401
        %406 = vst [vmem:[#allocation3 + $0x38] sm:$0xff] %v402
        %407 = vrot.lane.b32.xlu0 %v351, 15
        %v408 = vpop.permute.xlu0 %407
        %409 = vrot.lane.b32.xlu0 %v352, 15
        %v410 = vpop.permute.xlu0 %409
        %411 = vrot.lane.b32.xlu0 %v353, 15
        %v412 = vpop.permute.xlu0 %411
        %413 = vrot.lane.b32.xlu0 %v354, 15
        %v414 = vpop.permute.xlu0 %413
        %vm415 = vcmp.lt.s32.totalorder %v364, 15
        %v416 = vsel %vm415, %v412, %v414
        %v417 = vsel %vm415, %v410, %v412
        %v418 = vsel %vm415, %v408, %v410
        %v419 = vsel %vm415, %v414, %v408
        %v420 = vld [vmem:[#allocation7 + $0x40] sm:$0xff]
        %v421 = vld [vmem:[#allocation7 + $0x48] sm:$0xff]
        %v422 = vld [vmem:[#allocation7 + $0x50] sm:$0xff]
        %v423 = vld [vmem:[#allocation7 + $0x58] sm:$0xff]
        %v424 = vmul.f32 %v419, %v420
        %v425 = vmul.f32 %v418, %v421
        %v426 = vmul.f32 %v417, %v422
        %v427 = vmul.f32 %v416, %v423
        %428 = vst [vmem:[#allocation3 + $0x40] sm:$0xff] %v424
        %429 = vst [vmem:[#allocation3 + $0x48] sm:$0xff] %v425
        %430 = vst [vmem:[#allocation3 + $0x50] sm:$0xff] %v426
        %431 = vst [vmem:[#allocation3 + $0x58] sm:$0xff] %v427
        %432 = vrot.lane.b32.xlu0 %v351, 1
        %v433 = vpop.permute.xlu0 %432
        %434 = vrot.lane.b32.xlu0 %v352, 1
        %v435 = vpop.permute.xlu0 %434
        %436 = vrot.lane.b32.xlu0 %v353, 1
        %v437 = vpop.permute.xlu0 %436
        %438 = vrot.lane.b32.xlu0 %v354, 1
        %v439 = vpop.permute.xlu0 %438
        %vm440 = vcmp.lt.s32.totalorder %v364, 1
        %v441 = vsel %vm440, %v437, %v439
        %v442 = vsel %vm440, %v435, %v437
        %v443 = vsel %vm440, %v433, %v435
        %v444 = vsel %vm440, %v439, %v433
        %v445 = vld [vmem:[#allocation7 + $0x60] sm:$0xff]
        %v446 = vld [vmem:[#allocation7 + $0x68] sm:$0xff]
        %v447 = vld [vmem:[#allocation7 + $0x70] sm:$0xff]
        %v448 = vld [vmem:[#allocation7 + $0x78] sm:$0xff]
        %v449 = vmul.f32 %v444, %v445
        %v450 = vmul.f32 %v443, %v446
        %v451 = vmul.f32 %v442, %v447
        %v452 = vmul.f32 %v441, %v448
        %453 = vst [vmem:[#allocation3 + $0x60] sm:$0xff] %v449
        %454 = vst [vmem:[#allocation3 + $0x68] sm:$0xff] %v450
        %455 = vst [vmem:[#allocation3 + $0x70] sm:$0xff] %v451
        %456 = vst [vmem:[#allocation3 + $0x78] sm:$0xff] %v452
        %457 = vst [vmem:[#allocation3 + $0x80] sm:$0xff] %v351
        %458 = vst [vmem:[#allocation3 + $0x88] sm:$0xff] %v352
        %459 = vst [vmem:[#allocation3 + $0x90] sm:$0xff] %v353
        %460 = vst [vmem:[#allocation3 + $0x98] sm:$0xff] %v354
        %461 = vrot.lane.b32.xlu0 %v351, 127
        %v462 = vpop.permute.xlu0 %461
        %463 = vrot.lane.b32.xlu0 %v352, 127
        %v464 = vpop.permute.xlu0 %463
        %465 = vrot.lane.b32.xlu0 %v353, 127
        %v466 = vpop.permute.xlu0 %465
        %467 = vrot.lane.b32.xlu0 %v354, 127
        %v468 = vpop.permute.xlu0 %467
        %vm469 = vcmp.lt.s32.totalorder %v364, 127
        %v470 = vsel %vm469, %v466, %v468
        %v471 = vsel %vm469, %v464, %v466
        %v472 = vsel %vm469, %v462, %v464
        %v473 = vsel %vm469, %v468, %v462
        %v474 = vld [vmem:[#allocation7 + $0xa0] sm:$0xff]
        %v475 = vld [vmem:[#allocation7 + $0xa8] sm:$0xff]
        %v476 = vld [vmem:[#allocation7 + $0xb0] sm:$0xff]
        %v477 = vld [vmem:[#allocation7 + $0xb8] sm:$0xff]
        %v478 = vmul.f32 %v472, %v474
        %v479 = vmul.f32 %v471, %v475
        %v480 = vmul.f32 %v470, %v476
        %v481 = vmul.f32 %v473, %v477
        %482 = vst [vmem:[#allocation3 + $0xa0] sm:$0xff] %v478
        %483 = vst [vmem:[#allocation3 + $0xa8] sm:$0xff] %v479
        %484 = vst [vmem:[#allocation3 + $0xb0] sm:$0xff] %v480
        %485 = vst [vmem:[#allocation3 + $0xb8] sm:$0xff] %v481
        %486 = vrot.lane.b32.xlu0 %v351, 113
        %v487 = vpop.permute.xlu0 %486
        %488 = vrot.lane.b32.xlu0 %v352, 113
        %v489 = vpop.permute.xlu0 %488
        %490 = vrot.lane.b32.xlu0 %v353, 113
        %v491 = vpop.permute.xlu0 %490
        %492 = vrot.lane.b32.xlu0 %v354, 113
        %v493 = vpop.permute.xlu0 %492
        %vm494 = vcmp.lt.s32.totalorder %v364, 113
        %v495 = vsel %vm494, %v491, %v493
        %v496 = vsel %vm494, %v489, %v491
        %v497 = vsel %vm494, %v487, %v489
        %v498 = vsel %vm494, %v493, %v487
        %v499 = vld [vmem:[#allocation7 + $0xc0] sm:$0xff]
        %v500 = vld [vmem:[#allocation7 + $0xc8] sm:$0xff]
        %v501 = vld [vmem:[#allocation7 + $0xd0] sm:$0xff]
        %v502 = vld [vmem:[#allocation7 + $0xd8] sm:$0xff]
        %v503 = vmul.f32 %v497, %v499
        %v504 = vmul.f32 %v496, %v500
        %v505 = vmul.f32 %v495, %v501
        %v506 = vmul.f32 %v498, %v502
        %507 = vst [vmem:[#allocation3 + $0xc0] sm:$0xff] %v503
        %508 = vst [vmem:[#allocation3 + $0xc8] sm:$0xff] %v504
        %509 = vst [vmem:[#allocation3 + $0xd0] sm:$0xff] %v505
        %510 = vst [vmem:[#allocation3 + $0xd8] sm:$0xff] %v506
        %511 = vrot.lane.b32.xlu0 %v351, 112
        %v512 = vpop.permute.xlu0 %511
        %513 = vrot.lane.b32.xlu0 %v352, 112
        %v514 = vpop.permute.xlu0 %513
        %515 = vrot.lane.b32.xlu0 %v353, 112
        %v516 = vpop.permute.xlu0 %515
        %517 = vrot.lane.b32.xlu0 %v354, 112
        %v518 = vpop.permute.xlu0 %517
        %vm519 = vcmp.lt.s32.totalorder %v364, 112
        %v520 = vsel %vm519, %v516, %v518
        %v521 = vsel %vm519, %v514, %v516
        %v522 = vsel %vm519, %v512, %v514
        %v523 = vsel %vm519, %v518, %v512
        %v524 = vld [vmem:[#allocation7 + $0xe0] sm:$0xff]
        %v525 = vld [vmem:[#allocation7 + $0xe8] sm:$0xff]
        %v526 = vld [vmem:[#allocation7 + $0xf0] sm:$0xff]
        %v527 = vld [vmem:[#allocation7 + $0xf8] sm:$0xff]
        %v528 = vmul.f32 %v522, %v524
        %v529 = vmul.f32 %v521, %v525
        %v530 = vmul.f32 %v520, %v526
        %v531 = vmul.f32 %v523, %v527
        %532 = vst [vmem:[#allocation3 + $0xe0] sm:$0xff] %v528
        %533 = vst [vmem:[#allocation3 + $0xe8] sm:$0xff] %v529
        %534 = vst [vmem:[#allocation3 + $0xf0] sm:$0xff] %v530
        %535 = vst [vmem:[#allocation3 + $0xf8] sm:$0xff] %v531
        %536 = vrot.lane.b32.xlu0 %v351, 111
        %v537 = vpop.permute.xlu0 %536
        %538 = vrot.lane.b32.xlu0 %v352, 111
        %v539 = vpop.permute.xlu0 %538
        %540 = vrot.lane.b32.xlu0 %v353, 111
        %v541 = vpop.permute.xlu0 %540
        %542 = vrot.lane.b32.xlu0 %v354, 111
        %v543 = vpop.permute.xlu0 %542
        %vm544 = vcmp.lt.s32.totalorder %v364, 111
        %v545 = vsel %vm544, %v541, %v543
        %v546 = vsel %vm544, %v539, %v541
        %v547 = vsel %vm544, %v537, %v539
        %v548 = vsel %vm544, %v543, %v537
        %v549 = vld [vmem:[#allocation7 + $0x100] sm:$0xff]
        %v550 = vld [vmem:[#allocation7 + $0x108] sm:$0xff]
        %v551 = vld [vmem:[#allocation7 + $0x110] sm:$0xff]
        %v552 = vld [vmem:[#allocation7 + $0x118] sm:$0xff]
        %v553 = vmul.f32 %v547, %v549
        %v554 = vmul.f32 %v546, %v550
        %v555 = vmul.f32 %v545, %v551
        %v556 = vmul.f32 %v548, %v552
        %557 = vst [vmem:[#allocation3 + $0x100] sm:$0xff] %v553
        %558 = vst [vmem:[#allocation3 + $0x108] sm:$0xff] %v554
        %559 = vst [vmem:[#allocation3 + $0x110] sm:$0xff] %v555
        %560 = vst [vmem:[#allocation3 + $0x118] sm:$0xff] %v556
        %v561 = vld [vmem:[%s2] sm:$0xff]
        %v562 = vld [vmem:[#allocation3] sm:$0xff]
        %v563 = vld [vmem:[#allocation3 + $0x8] sm:$0xff]
        %v564 = vld [vmem:[#allocation3 + $0x10] sm:$0xff]
        %v565 = vld [vmem:[#allocation3 + $0x18] sm:$0xff]
        %v566 = vld [vmem:[#allocation3 + $0x20] sm:$0xff]
        %v567 = vld [vmem:[#allocation3 + $0x28] sm:$0xff]
        %v568 = vld [vmem:[#allocation3 + $0x30] sm:$0xff]
        %v569 = vld [vmem:[#allocation3 + $0x38] sm:$0xff]
        %v570 = vld [vmem:[#allocation3 + $0x40] sm:$0xff]
        %v571 = vld [vmem:[#allocation3 + $0x48] sm:$0xff]
        %v572 = vld [vmem:[#allocation3 + $0x50] sm:$0xff]
        %v573 = vld [vmem:[#allocation3 + $0x58] sm:$0xff]
        %v574 = vld [vmem:[#allocation3 + $0x60] sm:$0xff]
        %v575 = vld [vmem:[#allocation3 + $0x68] sm:$0xff]
        %v576 = vld [vmem:[#allocation3 + $0x70] sm:$0xff]
        %v577 = vld [vmem:[#allocation3 + $0x78] sm:$0xff]
        %v578 = vld [vmem:[#allocation3 + $0x80] sm:$0xff]
        %v579 = vld [vmem:[#allocation3 + $0x88] sm:$0xff]
        %v580 = vld [vmem:[#allocation3 + $0x90] sm:$0xff]
        %v581 = vld [vmem:[#allocation3 + $0x98] sm:$0xff]
        %v582 = vld [vmem:[#allocation3 + $0xa0] sm:$0xff]
        %v583 = vld [vmem:[#allocation3 + $0xa8] sm:$0xff]
        %v584 = vld [vmem:[#allocation3 + $0xb0] sm:$0xff]
        %v585 = vld [vmem:[#allocation3 + $0xb8] sm:$0xff]
        %v586 = vld [vmem:[#allocation3 + $0xc0] sm:$0xff]
        %v587 = vld [vmem:[#allocation3 + $0xc8] sm:$0xff]
        %v588 = vld [vmem:[#allocation3 + $0xd0] sm:$0xff]
        %v589 = vld [vmem:[#allocation3 + $0xd8] sm:$0xff]
        %v590 = vld [vmem:[#allocation3 + $0xe0] sm:$0xff]
        %v591 = vld [vmem:[#allocation3 + $0xe8] sm:$0xff]
        %v592 = vld [vmem:[#allocation3 + $0xf0] sm:$0xff]
        %v593 = vld [vmem:[#allocation3 + $0xf8] sm:$0xff]
        %v594 = vld [vmem:[#allocation3 + $0x100] sm:$0xff]
        %v595 = vld [vmem:[#allocation3 + $0x108] sm:$0xff]
        %v596 = vld [vmem:[#allocation3 + $0x110] sm:$0xff]
        %v597 = vld [vmem:[#allocation3 + $0x118] sm:$0xff]
        %v598 = vld [vmem:[%s3] sm:$0xff]
        %600 = vset.pattern.permute.xlu0 0
        %601 = vperm.xlu0 %600, %v598
        %v602 = vpop.permute.xlu0 %601
        %vm604 = vcmask 588800
        %v606 = vsel %vm604, %v561, 0
        %608 = vmatprep.subr.mxu0 %v563
        %609 = vmatpush1.msra.mxu0 %v562
        %610 = vmatprep.subr.mxu0 %v567
        %611 = vmatpush1.msra.mxu0 %v566
        %612 = vmatprep.subr.mxu0 %v571
        %613 = vmatpush1.msra.mxu0 %v570
        %614 = vmatprep.subr.mxu0 %v575
        %615 = vmatpush1.msra.mxu0 %v574
        %616 = vmatprep.subr.mxu0 %v579
        %617 = vmatpush1.msra.mxu0 %v578
        %618 = vmatprep.subr.mxu0 %v583
        %619 = vmatpush1.msra.mxu0 %v582
        %620 = vmatprep.subr.mxu0 %v587
        %621 = vmatpush1.msra.mxu0 %v586
        %622 = vmatprep.subr.mxu0 %v591
        %623 = vmatpush1.msra.mxu0 %v590
        %624 = vmatprep.subr.mxu0 %v595
        %625 = vmatpush1.msra.mxu0 %v594
        %626 = vmatprep.subr.mxu0 0.0
        %627 = vmatpush1.msra.mxu0 0.0
        %628 = vmatprep.subr.mxu0 0.0
        %629 = vmatpush1.msra.mxu0 0.0
        %630 = vmatprep.subr.mxu0 0.0
        %631 = vmatpush1.msra.mxu0 0.0
        %632 = vmatprep.subr.mxu0 0.0
        %633 = vmatpush1.msra.mxu0 0.0
        %634 = vmatprep.subr.mxu0 0.0
        %635 = vmatpush1.msra.mxu0 0.0
        %636 = vmatprep.subr.mxu0 0.0
        %637 = vmatpush1.msra.mxu0 0.0
        %638 = vmatprep.subr.mxu0 0.0
        %639 = vmatpush1.msra.mxu0 0.0
        %640 = vmatprep.subr.mxu0 0.0
        %641 = vmatpush1.msra.mxu0 0.0
        %642 = vmatprep.subr.mxu0 0.0
        %643 = vmatpush1.msra.mxu0 0.0
        %644 = vmatprep.subr.mxu0 0.0
        %645 = vmatpush1.msra.mxu0 0.0
        %646 = vmatprep.subr.mxu0 0.0
        %647 = vmatpush1.msra.mxu0 0.0
        %648 = vmatprep.subr.mxu0 0.0
        %649 = vmatpush1.msra.mxu0 0.0
        %650 = vmatprep.subr.mxu0 0.0
        %651 = vmatpush1.msra.mxu0 0.0
        %652 = vmatprep.subr.mxu0 0.0
        %653 = vmatpush1.msra.mxu0 0.0
        %654 = vmatprep.subr.mxu0 0.0
        %655 = vmatpush1.msra.mxu0 0.0
        %656 = vmatprep.subr.mxu0 0.0
        %657 = vmatpush1.msra.mxu0 0.0
        %658 = vmatprep.subr.mxu0 0.0
        %659 = vmatpush1.msra.mxu0 0.0
        %660 = vmatprep.subr.mxu0 0.0
        %661 = vmatpush1.msra.mxu0 0.0
        %662 = vmatprep.subr.mxu0 0.0
        %663 = vmatpush1.msra.mxu0 0.0
        %664 = vmatprep.subr.mxu0 0.0
        %665 = vmatpush1.msra.mxu0 0.0
        %666 = vmatprep.subr.mxu0 0.0
        %667 = vmatpush1.msra.mxu0 0.0
        %668 = vmatprep.subr.mxu0 0.0
        %669 = vmatpush1.msra.mxu0 0.0
        %670 = vmatprep.subr.mxu0 0.0
        %671 = vmatpush1.msra.mxu0 0.0
        %672 = vmatprep.mubr.f32.mxu0 0.0
        %673 = vmatmul.mubr.f32.gmra.mrb[0].mxu0 %v606
        %v674 = vpop.f32.mrb[0].mxu0
        %v675 = vadd.f32 %v602, %v674
        %v676 = vpop.f32.mrb[0].mxu0
        %v677 = vadd.f32 %v602, %v676
        %678 = vdwg.mxu0
        %679 = vmatprep.subr.mxu0 %v565
        %680 = vmatpush1.msra.mxu0 %v564
        %681 = vmatprep.subr.mxu0 %v569
        %682 = vmatpush1.msra.mxu0 %v568
        %683 = vmatprep.subr.mxu0 %v573
        %684 = vmatpush1.msra.mxu0 %v572
        %685 = vmatprep.subr.mxu0 %v577
        %686 = vmatpush1.msra.mxu0 %v576
        %687 = vmatprep.subr.mxu0 %v581
        %688 = vmatpush1.msra.mxu0 %v580
        %689 = vmatprep.subr.mxu0 %v585
        %690 = vmatpush1.msra.mxu0 %v584
        %691 = vmatprep.subr.mxu0 %v589
        %692 = vmatpush1.msra.mxu0 %v588
        %693 = vmatprep.subr.mxu0 %v593
        %694 = vmatpush1.msra.mxu0 %v592
        %695 = vmatprep.subr.mxu0 %v597
        %696 = vmatpush1.msra.mxu0 %v596
        %697 = vmatprep.subr.mxu0 0.0
        %698 = vmatpush1.msra.mxu0 0.0
        %699 = vmatprep.subr.mxu0 0.0
        %700 = vmatpush1.msra.mxu0 0.0
        %701 = vmatprep.subr.mxu0 0.0
        %702 = vmatpush1.msra.mxu0 0.0
        %703 = vmatprep.subr.mxu0 0.0
        %704 = vmatpush1.msra.mxu0 0.0
        %705 = vmatprep.subr.mxu0 0.0
        %706 = vmatpush1.msra.mxu0 0.0
        %707 = vmatprep.subr.mxu0 0.0
        %708 = vmatpush1.msra.mxu0 0.0
        %709 = vmatprep.subr.mxu0 0.0
        %710 = vmatpush1.msra.mxu0 0.0
        %711 = vmatprep.subr.mxu0 0.0
        %712 = vmatpush1.msra.mxu0 0.0
        %713 = vmatprep.subr.mxu0 0.0
        %714 = vmatpush1.msra.mxu0 0.0
        %715 = vmatprep.subr.mxu0 0.0
        %716 = vmatpush1.msra.mxu0 0.0
        %717 = vmatprep.subr.mxu0 0.0
        %718 = vmatpush1.msra.mxu0 0.0
        %719 = vmatprep.subr.mxu0 0.0
        %720 = vmatpush1.msra.mxu0 0.0
        %721 = vmatprep.subr.mxu0 0.0
        %722 = vmatpush1.msra.mxu0 0.0
        %723 = vmatprep.subr.mxu0 0.0
        %724 = vmatpush1.msra.mxu0 0.0
        %725 = vmatprep.subr.mxu0 0.0
        %726 = vmatpush1.msra.mxu0 0.0
        %727 = vmatprep.subr.mxu0 0.0
        %728 = vmatpush1.msra.mxu0 0.0
        %729 = vmatprep.subr.mxu0 0.0
        %730 = vmatpush1.msra.mxu0 0.0
        %731 = vmatprep.subr.mxu0 0.0
        %732 = vmatpush1.msra.mxu0 0.0
        %733 = vmatprep.subr.mxu0 0.0
        %734 = vmatpush1.msra.mxu0 0.0
        %735 = vmatprep.subr.mxu0 0.0
        %736 = vmatpush1.msra.mxu0 0.0
        %737 = vmatprep.subr.mxu0 0.0
        %738 = vmatpush1.msra.mxu0 0.0
        %739 = vmatprep.subr.mxu0 0.0
        %740 = vmatpush1.msra.mxu0 0.0
        %741 = vmatprep.subr.mxu0 0.0
        %742 = vmatpush1.msra.mxu0 0.0
        %743 = vmatprep.mubr.f32.mxu0 0.0
        %744 = vmatmul.mubr.f32.gmra.mrb[0].mxu0 %v606
        %v745 = vpop.f32.mrb[0].mxu0
        %v746 = vadd.f32 %v602, %v745
        %v747 = vpop.f32.mrb[0].mxu0
        %v748 = vadd.f32 %v602, %v747
        %749 = vdwg.mxu0
        %v750 = vmax.f32 %v675, 0.0
        %v751 = vmax.f32 %v677, 0.0
        %v752 = vmax.f32 %v746, 0.0
        %v753 = vmax.f32 %v748, 0.0
        %754 = vrot.lane.b32.xlu0 %v750, 17
        %v755 = vpop.permute.xlu0 %754
        %756 = vrot.lane.b32.xlu0 %v751, 17
        %v757 = vpop.permute.xlu0 %756
        %758 = vrot.lane.b32.xlu0 %v752, 17
        %v759 = vpop.permute.xlu0 %758
        %760 = vrot.lane.b32.xlu0 %v753, 17
        %v761 = vpop.permute.xlu0 %760
        %v762 = vsel %vm365, %v759, %v761
        %v763 = vsel %vm365, %v757, %v759
        %v764 = vsel %vm365, %v755, %v757
        %v765 = vsel %vm365, %v761, %v755
        %v766 = vld [vmem:[#allocation7] sm:$0xff]
        %v767 = vld [vmem:[#allocation7 + $0x8] sm:$0xff]
        %v768 = vld [vmem:[#allocation7 + $0x10] sm:$0xff]
        %v769 = vld [vmem:[#allocation7 + $0x18] sm:$0xff]
        %v770 = vmul.f32 %v765, %v766
        %v771 = vmul.f32 %v764, %v767
        %v772 = vmul.f32 %v763, %v768
        %v773 = vmul.f32 %v762, %v769
        %774 = vst [vmem:[#allocation3] sm:$0xff] %v770
        %775 = vst [vmem:[#allocation3 + $0x8] sm:$0xff] %v771
        %776 = vst [vmem:[#allocation3 + $0x10] sm:$0xff] %v772
        %777 = vst [vmem:[#allocation3 + $0x18] sm:$0xff] %v773
        %778 = vrot.lane.b32.xlu0 %v750, 16
        %v779 = vpop.permute.xlu0 %778
        %780 = vrot.lane.b32.xlu0 %v751, 16
        %v781 = vpop.permute.xlu0 %780
        %782 = vrot.lane.b32.xlu0 %v752, 16
        %v783 = vpop.permute.xlu0 %782
        %784 = vrot.lane.b32.xlu0 %v753, 16
        %v785 = vpop.permute.xlu0 %784
        %v786 = vsel %vm390, %v783, %v785
        %v787 = vsel %vm390, %v781, %v783
        %v788 = vsel %vm390, %v779, %v781
        %v789 = vsel %vm390, %v785, %v779
        %v790 = vld [vmem:[#allocation7 + $0x20] sm:$0xff]
        %v791 = vld [vmem:[#allocation7 + $0x28] sm:$0xff]
        %v792 = vld [vmem:[#allocation7 + $0x30] sm:$0xff]
        %v793 = vld [vmem:[#allocation7 + $0x38] sm:$0xff]
        %v794 = vmul.f32 %v789, %v790
        %v795 = vmul.f32 %v788, %v791
        %v796 = vmul.f32 %v787, %v792
        %v797 = vmul.f32 %v786, %v793
        %798 = vst [vmem:[#allocation3 + $0x20] sm:$0xff] %v794
        %799 = vst [vmem:[#allocation3 + $0x28] sm:$0xff] %v795
        %800 = vst [vmem:[#allocation3 + $0x30] sm:$0xff] %v796
        %801 = vst [vmem:[#allocation3 + $0x38] sm:$0xff] %v797
        %802 = vrot.lane.b32.xlu0 %v750, 15
        %v803 = vpop.permute.xlu0 %802
        %804 = vrot.lane.b32.xlu0 %v751, 15
        %v805 = vpop.permute.xlu0 %804
        %806 = vrot.lane.b32.xlu0 %v752, 15
        %v807 = vpop.permute.xlu0 %806
        %808 = vrot.lane.b32.xlu0 %v753, 15
        %v809 = vpop.permute.xlu0 %808
        %v810 = vsel %vm415, %v807, %v809
        %v811 = vsel %vm415, %v805, %v807
        %v812 = vsel %vm415, %v803, %v805
        %v813 = vsel %vm415, %v809, %v803
        %v814 = vld [vmem:[#allocation7 + $0x40] sm:$0xff]
        %v815 = vld [vmem:[#allocation7 + $0x48] sm:$0xff]
        %v816 = vld [vmem:[#allocation7 + $0x50] sm:$0xff]
        %v817 = vld [vmem:[#allocation7 + $0x58] sm:$0xff]
        %v818 = vmul.f32 %v813, %v814
        %v819 = vmul.f32 %v812, %v815
        %v820 = vmul.f32 %v811, %v816
        %v821 = vmul.f32 %v810, %v817
        %822 = vst [vmem:[#allocation3 + $0x40] sm:$0xff] %v818
        %823 = vst [vmem:[#allocation3 + $0x48] sm:$0xff] %v819
        %824 = vst [vmem:[#allocation3 + $0x50] sm:$0xff] %v820
        %825 = vst [vmem:[#allocation3 + $0x58] sm:$0xff] %v821
        %826 = vrot.lane.b32.xlu0 %v750, 1
        %v827 = vpop.permute.xlu0 %826
        %828 = vrot.lane.b32.xlu0 %v751, 1
        %v829 = vpop.permute.xlu0 %828
        %830 = vrot.lane.b32.xlu0 %v752, 1
        %v831 = vpop.permute.xlu0 %830
        %832 = vrot.lane.b32.xlu0 %v753, 1
        %v833 = vpop.permute.xlu0 %832
        %v834 = vsel %vm440, %v831, %v833
        %v835 = vsel %vm440, %v829, %v831
        %v836 = vsel %vm440, %v827, %v829
        %v837 = vsel %vm440, %v833, %v827
        %v838 = vld [vmem:[#allocation7 + $0x60] sm:$0xff]
        %v839 = vld [vmem:[#allocation7 + $0x68] sm:$0xff]
        %v840 = vld [vmem:[#allocation7 + $0x70] sm:$0xff]
        %v841 = vld [vmem:[#allocation7 + $0x78] sm:$0xff]
        %v842 = vmul.f32 %v837, %v838
        %v843 = vmul.f32 %v836, %v839
        %v844 = vmul.f32 %v835, %v840
        %v845 = vmul.f32 %v834, %v841
        %846 = vst [vmem:[#allocation3 + $0x60] sm:$0xff] %v842
        %847 = vst [vmem:[#allocation3 + $0x68] sm:$0xff] %v843
        %848 = vst [vmem:[#allocation3 + $0x70] sm:$0xff] %v844
        %849 = vst [vmem:[#allocation3 + $0x78] sm:$0xff] %v845
        %850 = vst [vmem:[#allocation3 + $0x80] sm:$0xff] %v750
        %851 = vst [vmem:[#allocation3 + $0x88] sm:$0xff] %v751
        %852 = vst [vmem:[#allocation3 + $0x90] sm:$0xff] %v752
        %853 = vst [vmem:[#allocation3 + $0x98] sm:$0xff] %v753
        %854 = vrot.lane.b32.xlu0 %v750, 127
        %v855 = vpop.permute.xlu0 %854
        %856 = vrot.lane.b32.xlu0 %v751, 127
        %v857 = vpop.permute.xlu0 %856
        %858 = vrot.lane.b32.xlu0 %v752, 127
        %v859 = vpop.permute.xlu0 %858
        %860 = vrot.lane.b32.xlu0 %v753, 127
        %v861 = vpop.permute.xlu0 %860
        %v862 = vsel %vm469, %v859, %v861
        %v863 = vsel %vm469, %v857, %v859
        %v864 = vsel %vm469, %v855, %v857
        %v865 = vsel %vm469, %v861, %v855
        %v866 = vld [vmem:[#allocation7 + $0xa0] sm:$0xff]
        %v867 = vld [vmem:[#allocation7 + $0xa8] sm:$0xff]
        %v868 = vld [vmem:[#allocation7 + $0xb0] sm:$0xff]
        %v869 = vld [vmem:[#allocation7 + $0xb8] sm:$0xff]
        %v870 = vmul.f32 %v864, %v866
        %v871 = vmul.f32 %v863, %v867
        %v872 = vmul.f32 %v862, %v868
        %v873 = vmul.f32 %v865, %v869
        %874 = vst [vmem:[#allocation3 + $0xa0] sm:$0xff] %v870
        %875 = vst [vmem:[#allocation3 + $0xa8] sm:$0xff] %v871
        %876 = vst [vmem:[#allocation3 + $0xb0] sm:$0xff] %v872
        %877 = vst [vmem:[#allocation3 + $0xb8] sm:$0xff] %v873
        %878 = vrot.lane.b32.xlu0 %v750, 113
        %v879 = vpop.permute.xlu0 %878
        %880 = vrot.lane.b32.xlu0 %v751, 113
        %v881 = vpop.permute.xlu0 %880
        %882 = vrot.lane.b32.xlu0 %v752, 113
        %v883 = vpop.permute.xlu0 %882
        %884 = vrot.lane.b32.xlu0 %v753, 113
        %v885 = vpop.permute.xlu0 %884
        %v886 = vsel %vm494, %v883, %v885
        %v887 = vsel %vm494, %v881, %v883
        %v888 = vsel %vm494, %v879, %v881
        %v889 = vsel %vm494, %v885, %v879
        %v890 = vld [vmem:[#allocation7 + $0xc0] sm:$0xff]
        %v891 = vld [vmem:[#allocation7 + $0xc8] sm:$0xff]
        %v892 = vld [vmem:[#allocation7 + $0xd0] sm:$0xff]
        %v893 = vld [vmem:[#allocation7 + $0xd8] sm:$0xff]
        %v894 = vmul.f32 %v888, %v890
        %v895 = vmul.f32 %v887, %v891
        %v896 = vmul.f32 %v886, %v892
        %v897 = vmul.f32 %v889, %v893
        %898 = vst [vmem:[#allocation3 + $0xc0] sm:$0xff] %v894
        %899 = vst [vmem:[#allocation3 + $0xc8] sm:$0xff] %v895
        %900 = vst [vmem:[#allocation3 + $0xd0] sm:$0xff] %v896
        %901 = vst [vmem:[#allocation3 + $0xd8] sm:$0xff] %v897
        %902 = vrot.lane.b32.xlu0 %v750, 112
        %v903 = vpop.permute.xlu0 %902
        %904 = vrot.lane.b32.xlu0 %v751, 112
        %v905 = vpop.permute.xlu0 %904
        %906 = vrot.lane.b32.xlu0 %v752, 112
        %v907 = vpop.permute.xlu0 %906
        %908 = vrot.lane.b32.xlu0 %v753, 112
        %v909 = vpop.permute.xlu0 %908
        %v910 = vsel %vm519, %v907, %v909
        %v911 = vsel %vm519, %v905, %v907
        %v912 = vsel %vm519, %v903, %v905
        %v913 = vsel %vm519, %v909, %v903
        %v914 = vld [vmem:[#allocation7 + $0xe0] sm:$0xff]
        %v915 = vld [vmem:[#allocation7 + $0xe8] sm:$0xff]
        %v916 = vld [vmem:[#allocation7 + $0xf0] sm:$0xff]
        %v917 = vld [vmem:[#allocation7 + $0xf8] sm:$0xff]
        %v918 = vmul.f32 %v912, %v914
        %v919 = vmul.f32 %v911, %v915
        %v920 = vmul.f32 %v910, %v916
        %v921 = vmul.f32 %v913, %v917
        %922 = vst [vmem:[#allocation3 + $0xe0] sm:$0xff] %v918
        %923 = vst [vmem:[#allocation3 + $0xe8] sm:$0xff] %v919
        %924 = vst [vmem:[#allocation3 + $0xf0] sm:$0xff] %v920
        %925 = vst [vmem:[#allocation3 + $0xf8] sm:$0xff] %v921
        %926 = vrot.lane.b32.xlu0 %v750, 111
        %v927 = vpop.permute.xlu0 %926
        %928 = vrot.lane.b32.xlu0 %v751, 111
        %v929 = vpop.permute.xlu0 %928
        %930 = vrot.lane.b32.xlu0 %v752, 111
        %v931 = vpop.permute.xlu0 %930
        %932 = vrot.lane.b32.xlu0 %v753, 111
        %v933 = vpop.permute.xlu0 %932
        %v934 = vsel %vm544, %v931, %v933
        %v935 = vsel %vm544, %v929, %v931
        %v936 = vsel %vm544, %v927, %v929
        %v937 = vsel %vm544, %v933, %v927
        %v938 = vld [vmem:[#allocation7 + $0x100] sm:$0xff]
        %v939 = vld [vmem:[#allocation7 + $0x108] sm:$0xff]
        %v940 = vld [vmem:[#allocation7 + $0x110] sm:$0xff]
        %v941 = vld [vmem:[#allocation7 + $0x118] sm:$0xff]
        %v942 = vmul.f32 %v936, %v938
        %v943 = vmul.f32 %v935, %v939
        %v944 = vmul.f32 %v934, %v940
        %v945 = vmul.f32 %v937, %v941
        %946 = vst [vmem:[#allocation3 + $0x100] sm:$0xff] %v942
        %947 = vst [vmem:[#allocation3 + $0x108] sm:$0xff] %v943
        %948 = vst [vmem:[#allocation3 + $0x110] sm:$0xff] %v944
        %949 = vst [vmem:[#allocation3 + $0x118] sm:$0xff] %v945
        %v950 = vld [vmem:[%s4] sm:$0xff]
        %v951 = vld [vmem:[#allocation3] sm:$0xff]
        %v952 = vld [vmem:[#allocation3 + $0x8] sm:$0xff]
        %v953 = vld [vmem:[#allocation3 + $0x10] sm:$0xff]
        %v954 = vld [vmem:[#allocation3 + $0x18] sm:$0xff]
        %v955 = vld [vmem:[#allocation3 + $0x20] sm:$0xff]
        %v956 = vld [vmem:[#allocation3 + $0x28] sm:$0xff]
        %v957 = vld [vmem:[#allocation3 + $0x30] sm:$0xff]
        %v958 = vld [vmem:[#allocation3 + $0x38] sm:$0xff]
        %v959 = vld [vmem:[#allocation3 + $0x40] sm:$0xff]
        %v960 = vld [vmem:[#allocation3 + $0x48] sm:$0xff]
        %v961 = vld [vmem:[#allocation3 + $0x50] sm:$0xff]
        %v962 = vld [vmem:[#allocation3 + $0x58] sm:$0xff]
        %v963 = vld [vmem:[#allocation3 + $0x60] sm:$0xff]
        %v964 = vld [vmem:[#allocation3 + $0x68] sm:$0xff]
        %v965 = vld [vmem:[#allocation3 + $0x70] sm:$0xff]
        %v966 = vld [vmem:[#allocation3 + $0x78] sm:$0xff]
        %v967 = vld [vmem:[#allocation3 + $0x80] sm:$0xff]
        %v968 = vld [vmem:[#allocation3 + $0x88] sm:$0xff]
        %v969 = vld [vmem:[#allocation3 + $0x90] sm:$0xff]
        %v970 = vld [vmem:[#allocation3 + $0x98] sm:$0xff]
        %v971 = vld [vmem:[#allocation3 + $0xa0] sm:$0xff]
        %v972 = vld [vmem:[#allocation3 + $0xa8] sm:$0xff]
        %v973 = vld [vmem:[#allocation3 + $0xb0] sm:$0xff]
        %v974 = vld [vmem:[#allocation3 + $0xb8] sm:$0xff]
        %v975 = vld [vmem:[#allocation3 + $0xc0] sm:$0xff]
        %v976 = vld [vmem:[#allocation3 + $0xc8] sm:$0xff]
        %v977 = vld [vmem:[#allocation3 + $0xd0] sm:$0xff]
        %v978 = vld [vmem:[#allocation3 + $0xd8] sm:$0xff]
        %v979 = vld [vmem:[#allocation3 + $0xe0] sm:$0xff]
        %v980 = vld [vmem:[#allocation3 + $0xe8] sm:$0xff]
        %v981 = vld [vmem:[#allocation3 + $0xf0] sm:$0xff]
        %v982 = vld [vmem:[#allocation3 + $0xf8] sm:$0xff]
        %v983 = vld [vmem:[#allocation3 + $0x100] sm:$0xff]
        %v984 = vld [vmem:[#allocation3 + $0x108] sm:$0xff]
        %v985 = vld [vmem:[#allocation3 + $0x110] sm:$0xff]
        %v986 = vld [vmem:[#allocation3 + $0x118] sm:$0xff]
        %v987 = vld [vmem:[%s5] sm:$0xff]
        %989 = vset.pattern.permute.xlu0 0
        %990 = vperm.xlu0 %989, %v987
        %v991 = vpop.permute.xlu0 %990
        %v994 = vsel %vm604, %v950, 0
        %996 = vmatprep.subr.mxu0 %v952
        %997 = vmatpush1.msra.mxu0 %v951
        %998 = vmatprep.subr.mxu0 %v956
        %999 = vmatpush1.msra.mxu0 %v955
        %1000 = vmatprep.subr.mxu0 %v960
        %1001 = vmatpush1.msra.mxu0 %v959
        %1002 = vmatprep.subr.mxu0 %v964
        %1003 = vmatpush1.msra.mxu0 %v963
        %1004 = vmatprep.subr.mxu0 %v968
        %1005 = vmatpush1.msra.mxu0 %v967
        %1006 = vmatprep.subr.mxu0 %v972
        %1007 = vmatpush1.msra.mxu0 %v971
        %1008 = vmatprep.subr.mxu0 %v976
        %1009 = vmatpush1.msra.mxu0 %v975
        %1010 = vmatprep.subr.mxu0 %v980
        %1011 = vmatpush1.msra.mxu0 %v979
        %1012 = vmatprep.subr.mxu0 %v984
        %1013 = vmatpush1.msra.mxu0 %v983
        %1014 = vmatprep.subr.mxu0 0.0
        %1015 = vmatpush1.msra.mxu0 0.0
        %1016 = vmatprep.subr.mxu0 0.0
        %1017 = vmatpush1.msra.mxu0 0.0
        %1018 = vmatprep.subr.mxu0 0.0
        %1019 = vmatpush1.msra.mxu0 0.0
        %1020 = vmatprep.subr.mxu0 0.0
        %1021 = vmatpush1.msra.mxu0 0.0
        %1022 = vmatprep.subr.mxu0 0.0
        %1023 = vmatpush1.msra.mxu0 0.0
        %1024 = vmatprep.subr.mxu0 0.0
        %1025 = vmatpush1.msra.mxu0 0.0
        %1026 = vmatprep.subr.mxu0 0.0
        %1027 = vmatpush1.msra.mxu0 0.0
        %1028 = vmatprep.subr.mxu0 0.0
        %1029 = vmatpush1.msra.mxu0 0.0
        %1030 = vmatprep.subr.mxu0 0.0
        %1031 = vmatpush1.msra.mxu0 0.0
        %1032 = vmatprep.subr.mxu0 0.0
        %1033 = vmatpush1.msra.mxu0 0.0
        %1034 = vmatprep.subr.mxu0 0.0
        %1035 = vmatpush1.msra.mxu0 0.0
        %1036 = vmatprep.subr.mxu0 0.0
        %1037 = vmatpush1.msra.mxu0 0.0
        %1038 = vmatprep.subr.mxu0 0.0
        %1039 = vmatpush1.msra.mxu0 0.0
        %1040 = vmatprep.subr.mxu0 0.0
        %1041 = vmatpush1.msra.mxu0 0.0
        %1042 = vmatprep.subr.mxu0 0.0
        %1043 = vmatpush1.msra.mxu0 0.0
        %1044 = vmatprep.subr.mxu0 0.0
        %1045 = vmatpush1.msra.mxu0 0.0
        %1046 = vmatprep.subr.mxu0 0.0
        %1047 = vmatpush1.msra.mxu0 0.0
        %1048 = vmatprep.subr.mxu0 0.0
        %1049 = vmatpush1.msra.mxu0 0.0
        %1050 = vmatprep.subr.mxu0 0.0
        %1051 = vmatpush1.msra.mxu0 0.0
        %1052 = vmatprep.subr.mxu0 0.0
        %1053 = vmatpush1.msra.mxu0 0.0
        %1054 = vmatprep.subr.mxu0 0.0
        %1055 = vmatpush1.msra.mxu0 0.0
        %1056 = vmatprep.subr.mxu0 0.0
        %1057 = vmatpush1.msra.mxu0 0.0
        %1058 = vmatprep.subr.mxu0 0.0
        %1059 = vmatpush1.msra.mxu0 0.0
        %1060 = vmatprep.mubr.f32.mxu0 0.0
        %1061 = vmatmul.mubr.f32.gmra.mrb[0].mxu0 %v994
        %v1062 = vpop.f32.mrb[0].mxu0
        %v1063 = vadd.f32 %v991, %v1062
        %v1064 = vpop.f32.mrb[0].mxu0
        %v1065 = vadd.f32 %v991, %v1064
        %1066 = vdwg.mxu0
        %1067 = vmatprep.subr.mxu0 %v954
        %1068 = vmatpush1.msra.mxu0 %v953
        %1069 = vmatprep.subr.mxu0 %v958
        %1070 = vmatpush1.msra.mxu0 %v957
        %1071 = vmatprep.subr.mxu0 %v962
        %1072 = vmatpush1.msra.mxu0 %v961
        %1073 = vmatprep.subr.mxu0 %v966
        %1074 = vmatpush1.msra.mxu0 %v965
        %1075 = vmatprep.subr.mxu0 %v970
        %1076 = vmatpush1.msra.mxu0 %v969
        %1077 = vmatprep.subr.mxu0 %v974
        %1078 = vmatpush1.msra.mxu0 %v973
        %1079 = vmatprep.subr.mxu0 %v978
        %1080 = vmatpush1.msra.mxu0 %v977
        %1081 = vmatprep.subr.mxu0 %v982
        %1082 = vmatpush1.msra.mxu0 %v981
        %1083 = vmatprep.subr.mxu0 %v986
        %1084 = vmatpush1.msra.mxu0 %v985
        %1085 = vmatprep.subr.mxu0 0.0
        %1086 = vmatpush1.msra.mxu0 0.0
        %1087 = vmatprep.subr.mxu0 0.0
        %1088 = vmatpush1.msra.mxu0 0.0
        %1089 = vmatprep.subr.mxu0 0.0
        %1090 = vmatpush1.msra.mxu0 0.0
        %1091 = vmatprep.subr.mxu0 0.0
        %1092 = vmatpush1.msra.mxu0 0.0
        %1093 = vmatprep.subr.mxu0 0.0
        %1094 = vmatpush1.msra.mxu0 0.0
        %1095 = vmatprep.subr.mxu0 0.0
        %1096 = vmatpush1.msra.mxu0 0.0
        %1097 = vmatprep.subr.mxu0 0.0
        %1098 = vmatpush1.msra.mxu0 0.0
        %1099 = vmatprep.subr.mxu0 0.0
        %1100 = vmatpush1.msra.mxu0 0.0
        %1101 = vmatprep.subr.mxu0 0.0
        %1102 = vmatpush1.msra.mxu0 0.0
        %1103 = vmatprep.subr.mxu0 0.0
        %1104 = vmatpush1.msra.mxu0 0.0
        %1105 = vmatprep.subr.mxu0 0.0
        %1106 = vmatpush1.msra.mxu0 0.0
        %1107 = vmatprep.subr.mxu0 0.0
        %1108 = vmatpush1.msra.mxu0 0.0
        %1109 = vmatprep.subr.mxu0 0.0
        %1110 = vmatpush1.msra.mxu0 0.0
        %1111 = vmatprep.subr.mxu0 0.0
        %1112 = vmatpush1.msra.mxu0 0.0
        %1113 = vmatprep.subr.mxu0 0.0
        %1114 = vmatpush1.msra.mxu0 0.0
        %1115 = vmatprep.subr.mxu0 0.0
        %1116 = vmatpush1.msra.mxu0 0.0
        %1117 = vmatprep.subr.mxu0 0.0
        %1118 = vmatpush1.msra.mxu0 0.0
        %1119 = vmatprep.subr.mxu0 0.0
        %1120 = vmatpush1.msra.mxu0 0.0
        %1121 = vmatprep.subr.mxu0 0.0
        %1122 = vmatpush1.msra.mxu0 0.0
        %1123 = vmatprep.subr.mxu0 0.0
        %1124 = vmatpush1.msra.mxu0 0.0
        %1125 = vmatprep.subr.mxu0 0.0
        %1126 = vmatpush1.msra.mxu0 0.0
        %1127 = vmatprep.subr.mxu0 0.0
        %1128 = vmatpush1.msra.mxu0 0.0
        %1129 = vmatprep.subr.mxu0 0.0
        %1130 = vmatpush1.msra.mxu0 0.0
        %1131 = vmatprep.mubr.f32.mxu0 0.0
        %1132 = vmatmul.mubr.f32.gmra.mrb[0].mxu0 %v994
        %v1133 = vpop.f32.mrb[0].mxu0
        %v1134 = vadd.f32 %v991, %v1133
        %v1135 = vpop.f32.mrb[0].mxu0
        %v1136 = vadd.f32 %v991, %v1135
        %1137 = vdwg.mxu0
        %v1138 = vmax.f32 %v1063, 0.0
        %v1139 = vmax.f32 %v1065, 0.0
        %v1140 = vmax.f32 %v1134, 0.0
        %v1141 = vmax.f32 %v1136, 0.0
        %1142 = vrot.lane.b32.xlu0 %v1138, 17
        %v1143 = vpop.permute.xlu0 %1142
        %1144 = vrot.lane.b32.xlu0 %v1139, 17
        %v1145 = vpop.permute.xlu0 %1144
        %1146 = vrot.lane.b32.xlu0 %v1140, 17
        %v1147 = vpop.permute.xlu0 %1146
        %1148 = vrot.lane.b32.xlu0 %v1141, 17
        %v1149 = vpop.permute.xlu0 %1148
        %v1150 = vsel %vm365, %v1147, %v1149
        %v1151 = vsel %vm365, %v1145, %v1147
        %v1152 = vsel %vm365, %v1143, %v1145
        %v1153 = vsel %vm365, %v1149, %v1143
        %v1154 = vld [vmem:[#allocation7] sm:$0xff]
        %v1155 = vld [vmem:[#allocation7 + $0x8] sm:$0xff]
        %v1156 = vld [vmem:[#allocation7 + $0x10] sm:$0xff]
        %v1157 = vld [vmem:[#allocation7 + $0x18] sm:$0xff]
        %v1158 = vmul.f32 %v1153, %v1154
        %v1159 = vmul.f32 %v1152, %v1155
        %v1160 = vmul.f32 %v1151, %v1156
        %v1161 = vmul.f32 %v1150, %v1157
        %1162 = vst [vmem:[#allocation3] sm:$0xff] %v1158
        %1163 = vst [vmem:[#allocation3 + $0x8] sm:$0xff] %v1159
        %1164 = vst [vmem:[#allocation3 + $0x10] sm:$0xff] %v1160
        %1165 = vst [vmem:[#allocation3 + $0x18] sm:$0xff] %v1161
        %1166 = vrot.lane.b32.xlu0 %v1138, 16
        %v1167 = vpop.permute.xlu0 %1166
        %1168 = vrot.lane.b32.xlu0 %v1139, 16
        %v1169 = vpop.permute.xlu0 %1168
        %1170 = vrot.lane.b32.xlu0 %v1140, 16
        %v1171 = vpop.permute.xlu0 %1170
        %1172 = vrot.lane.b32.xlu0 %v1141, 16
        %v1173 = vpop.permute.xlu0 %1172
        %v1174 = vsel %vm390, %v1171, %v1173
        %v1175 = vsel %vm390, %v1169, %v1171
        %v1176 = vsel %vm390, %v1167, %v1169
        %v1177 = vsel %vm390, %v1173, %v1167
        %v1178 = vld [vmem:[#allocation7 + $0x20] sm:$0xff]
        %v1179 = vld [vmem:[#allocation7 + $0x28] sm:$0xff]
        %v1180 = vld [vmem:[#allocation7 + $0x30] sm:$0xff]
        %v1181 = vld [vmem:[#allocation7 + $0x38] sm:$0xff]
        %v1182 = vmul.f32 %v1177, %v1178
        %v1183 = vmul.f32 %v1176, %v1179
        %v1184 = vmul.f32 %v1175, %v1180
        %v1185 = vmul.f32 %v1174, %v1181
        %1186 = vst [vmem:[#allocation3 + $0x20] sm:$0xff] %v1182
        %1187 = vst [vmem:[#allocation3 + $0x28] sm:$0xff] %v1183
        %1188 = vst [vmem:[#allocation3 + $0x30] sm:$0xff] %v1184
        %1189 = vst [vmem:[#allocation3 + $0x38] sm:$0xff] %v1185
        %1190 = vrot.lane.b32.xlu0 %v1138, 15
        %v1191 = vpop.permute.xlu0 %1190
        %1192 = vrot.lane.b32.xlu0 %v1139, 15
        %v1193 = vpop.permute.xlu0 %1192
        %1194 = vrot.lane.b32.xlu0 %v1140, 15
        %v1195 = vpop.permute.xlu0 %1194
        %1196 = vrot.lane.b32.xlu0 %v1141, 15
        %v1197 = vpop.permute.xlu0 %1196
        %v1198 = vsel %vm415, %v1195, %v1197
        %v1199 = vsel %vm415, %v1193, %v1195
        %v1200 = vsel %vm415, %v1191, %v1193
        %v1201 = vsel %vm415, %v1197, %v1191
        %v1202 = vld [vmem:[#allocation7 + $0x40] sm:$0xff]
        %v1203 = vld [vmem:[#allocation7 + $0x48] sm:$0xff]
        %v1204 = vld [vmem:[#allocation7 + $0x50] sm:$0xff]
        %v1205 = vld [vmem:[#allocation7 + $0x58] sm:$0xff]
        %v1206 = vmul.f32 %v1201, %v1202
        %v1207 = vmul.f32 %v1200, %v1203
        %v1208 = vmul.f32 %v1199, %v1204
        %v1209 = vmul.f32 %v1198, %v1205
        %1210 = vst [vmem:[#allocation3 + $0x40] sm:$0xff] %v1206
        %1211 = vst [vmem:[#allocation3 + $0x48] sm:$0xff] %v1207
        %1212 = vst [vmem:[#allocation3 + $0x50] sm:$0xff] %v1208
        %1213 = vst [vmem:[#allocation3 + $0x58] sm:$0xff] %v1209
        %1214 = vrot.lane.b32.xlu0 %v1138, 1
        %v1215 = vpop.permute.xlu0 %1214
        %1216 = vrot.lane.b32.xlu0 %v1139, 1
        %v1217 = vpop.permute.xlu0 %1216
        %1218 = vrot.lane.b32.xlu0 %v1140, 1
        %v1219 = vpop.permute.xlu0 %1218
        %1220 = vrot.lane.b32.xlu0 %v1141, 1
        %v1221 = vpop.permute.xlu0 %1220
        %v1222 = vsel %vm440, %v1219, %v1221
        %v1223 = vsel %vm440, %v1217, %v1219
        %v1224 = vsel %vm440, %v1215, %v1217
        %v1225 = vsel %vm440, %v1221, %v1215
        %v1226 = vld [vmem:[#allocation7 + $0x60] sm:$0xff]
        %v1227 = vld [vmem:[#allocation7 + $0x68] sm:$0xff]
        %v1228 = vld [vmem:[#allocation7 + $0x70] sm:$0xff]
        %v1229 = vld [vmem:[#allocation7 + $0x78] sm:$0xff]
        %v1230 = vmul.f32 %v1225, %v1226
        %v1231 = vmul.f32 %v1224, %v1227
        %v1232 = vmul.f32 %v1223, %v1228
        %v1233 = vmul.f32 %v1222, %v1229
        %1234 = vst [vmem:[#allocation3 + $0x60] sm:$0xff] %v1230
        %1235 = vst [vmem:[#allocation3 + $0x68] sm:$0xff] %v1231
        %1236 = vst [vmem:[#allocation3 + $0x70] sm:$0xff] %v1232
        %1237 = vst [vmem:[#allocation3 + $0x78] sm:$0xff] %v1233
        %1238 = vst [vmem:[#allocation3 + $0x80] sm:$0xff] %v1138
        %1239 = vst [vmem:[#allocation3 + $0x88] sm:$0xff] %v1139
        %1240 = vst [vmem:[#allocation3 + $0x90] sm:$0xff] %v1140
        %1241 = vst [vmem:[#allocation3 + $0x98] sm:$0xff] %v1141
        %1242 = vrot.lane.b32.xlu0 %v1138, 127
        %v1243 = vpop.permute.xlu0 %1242
        %1244 = vrot.lane.b32.xlu0 %v1139, 127
        %v1245 = vpop.permute.xlu0 %1244
        %1246 = vrot.lane.b32.xlu0 %v1140, 127
        %v1247 = vpop.permute.xlu0 %1246
        %1248 = vrot.lane.b32.xlu0 %v1141, 127
        %v1249 = vpop.permute.xlu0 %1248
        %v1250 = vsel %vm469, %v1247, %v1249
        %v1251 = vsel %vm469, %v1245, %v1247
        %v1252 = vsel %vm469, %v1243, %v1245
        %v1253 = vsel %vm469, %v1249, %v1243
        %v1254 = vld [vmem:[#allocation7 + $0xa0] sm:$0xff]
        %v1255 = vld [vmem:[#allocation7 + $0xa8] sm:$0xff]
        %v1256 = vld [vmem:[#allocation7 + $0xb0] sm:$0xff]
        %v1257 = vld [vmem:[#allocation7 + $0xb8] sm:$0xff]
        %v1258 = vmul.f32 %v1252, %v1254
        %v1259 = vmul.f32 %v1251, %v1255
        %v1260 = vmul.f32 %v1250, %v1256
        %v1261 = vmul.f32 %v1253, %v1257
        %1262 = vst [vmem:[#allocation3 + $0xa0] sm:$0xff] %v1258
        %1263 = vst [vmem:[#allocation3 + $0xa8] sm:$0xff] %v1259
        %1264 = vst [vmem:[#allocation3 + $0xb0] sm:$0xff] %v1260
        %1265 = vst [vmem:[#allocation3 + $0xb8] sm:$0xff] %v1261
        %1266 = vrot.lane.b32.xlu0 %v1138, 113
        %v1267 = vpop.permute.xlu0 %1266
        %1268 = vrot.lane.b32.xlu0 %v1139, 113
        %v1269 = vpop.permute.xlu0 %1268
        %1270 = vrot.lane.b32.xlu0 %v1140, 113
        %v1271 = vpop.permute.xlu0 %1270
        %1272 = vrot.lane.b32.xlu0 %v1141, 113
        %v1273 = vpop.permute.xlu0 %1272
        %v1274 = vsel %vm494, %v1271, %v1273
        %v1275 = vsel %vm494, %v1269, %v1271
        %v1276 = vsel %vm494, %v1267, %v1269
        %v1277 = vsel %vm494, %v1273, %v1267
        %v1278 = vld [vmem:[#allocation7 + $0xc0] sm:$0xff]
        %v1279 = vld [vmem:[#allocation7 + $0xc8] sm:$0xff]
        %v1280 = vld [vmem:[#allocation7 + $0xd0] sm:$0xff]
        %v1281 = vld [vmem:[#allocation7 + $0xd8] sm:$0xff]
        %v1282 = vmul.f32 %v1276, %v1278
        %v1283 = vmul.f32 %v1275, %v1279
        %v1284 = vmul.f32 %v1274, %v1280
        %v1285 = vmul.f32 %v1277, %v1281
        %1286 = vst [vmem:[#allocation3 + $0xc0] sm:$0xff] %v1282
        %1287 = vst [vmem:[#allocation3 + $0xc8] sm:$0xff] %v1283
        %1288 = vst [vmem:[#allocation3 + $0xd0] sm:$0xff] %v1284
        %1289 = vst [vmem:[#allocation3 + $0xd8] sm:$0xff] %v1285
        %1290 = vrot.lane.b32.xlu0 %v1138, 112
        %v1291 = vpop.permute.xlu0 %1290
        %1292 = vrot.lane.b32.xlu0 %v1139, 112
        %v1293 = vpop.permute.xlu0 %1292
        %1294 = vrot.lane.b32.xlu0 %v1140, 112
        %v1295 = vpop.permute.xlu0 %1294
        %1296 = vrot.lane.b32.xlu0 %v1141, 112
        %v1297 = vpop.permute.xlu0 %1296
        %v1298 = vsel %vm519, %v1295, %v1297
        %v1299 = vsel %vm519, %v1293, %v1295
        %v1300 = vsel %vm519, %v1291, %v1293
        %v1301 = vsel %vm519, %v1297, %v1291
        %v1302 = vld [vmem:[#allocation7 + $0xe0] sm:$0xff]
        %v1303 = vld [vmem:[#allocation7 + $0xe8] sm:$0xff]
        %v1304 = vld [vmem:[#allocation7 + $0xf0] sm:$0xff]
        %v1305 = vld [vmem:[#allocation7 + $0xf8] sm:$0xff]
        %v1306 = vmul.f32 %v1300, %v1302
        %v1307 = vmul.f32 %v1299, %v1303
        %v1308 = vmul.f32 %v1298, %v1304
        %v1309 = vmul.f32 %v1301, %v1305
        %1310 = vst [vmem:[#allocation3 + $0xe0] sm:$0xff] %v1306
        %1311 = vst [vmem:[#allocation3 + $0xe8] sm:$0xff] %v1307
        %1312 = vst [vmem:[#allocation3 + $0xf0] sm:$0xff] %v1308
        %1313 = vst [vmem:[#allocation3 + $0xf8] sm:$0xff] %v1309
        %1314 = vrot.lane.b32.xlu0 %v1138, 111
        %v1315 = vpop.permute.xlu0 %1314
        %1316 = vrot.lane.b32.xlu0 %v1139, 111
        %v1317 = vpop.permute.xlu0 %1316
        %1318 = vrot.lane.b32.xlu0 %v1140, 111
        %v1319 = vpop.permute.xlu0 %1318
        %1320 = vrot.lane.b32.xlu0 %v1141, 111
        %v1321 = vpop.permute.xlu0 %1320
        %v1322 = vsel %vm544, %v1319, %v1321
        %v1323 = vsel %vm544, %v1317, %v1319
        %v1324 = vsel %vm544, %v1315, %v1317
        %v1325 = vsel %vm544, %v1321, %v1315
        %v1326 = vld [vmem:[#allocation7 + $0x100] sm:$0xff]
        %v1327 = vld [vmem:[#allocation7 + $0x108] sm:$0xff]
        %v1328 = vld [vmem:[#allocation7 + $0x110] sm:$0xff]
        %v1329 = vld [vmem:[#allocation7 + $0x118] sm:$0xff]
        %v1330 = vmul.f32 %v1324, %v1326
        %v1331 = vmul.f32 %v1323, %v1327
        %v1332 = vmul.f32 %v1322, %v1328
        %v1333 = vmul.f32 %v1325, %v1329
        %1334 = vst [vmem:[#allocation3 + $0x100] sm:$0xff] %v1330
        %1335 = vst [vmem:[#allocation3 + $0x108] sm:$0xff] %v1331
        %1336 = vst [vmem:[#allocation3 + $0x110] sm:$0xff] %v1332
        %1337 = vst [vmem:[#allocation3 + $0x118] sm:$0xff] %v1333
        %v1338 = vld [vmem:[%s6] sm:$0xff]
        %v1339 = vld [vmem:[#allocation3] sm:$0xff]
        %v1340 = vld [vmem:[#allocation3 + $0x8] sm:$0xff]
        %v1341 = vld [vmem:[#allocation3 + $0x10] sm:$0xff]
        %v1342 = vld [vmem:[#allocation3 + $0x18] sm:$0xff]
        %v1343 = vld [vmem:[#allocation3 + $0x20] sm:$0xff]
        %v1344 = vld [vmem:[#allocation3 + $0x28] sm:$0xff]
        %v1345 = vld [vmem:[#allocation3 + $0x30] sm:$0xff]
        %v1346 = vld [vmem:[#allocation3 + $0x38] sm:$0xff]
        %v1347 = vld [vmem:[#allocation3 + $0x40] sm:$0xff]
        %v1348 = vld [vmem:[#allocation3 + $0x48] sm:$0xff]
        %v1349 = vld [vmem:[#allocation3 + $0x50] sm:$0xff]
        %v1350 = vld [vmem:[#allocation3 + $0x58] sm:$0xff]
        %v1351 = vld [vmem:[#allocation3 + $0x60] sm:$0xff]
        %v1352 = vld [vmem:[#allocation3 + $0x68] sm:$0xff]
        %v1353 = vld [vmem:[#allocation3 + $0x70] sm:$0xff]
        %v1354 = vld [vmem:[#allocation3 + $0x78] sm:$0xff]
        %v1355 = vld [vmem:[#allocation3 + $0x80] sm:$0xff]
        %v1356 = vld [vmem:[#allocation3 + $0x88] sm:$0xff]
        %v1357 = vld [vmem:[#allocation3 + $0x90] sm:$0xff]
        %v1358 = vld [vmem:[#allocation3 + $0x98] sm:$0xff]
        %v1359 = vld [vmem:[#allocation3 + $0xa0] sm:$0xff]
        %v1360 = vld [vmem:[#allocation3 + $0xa8] sm:$0xff]
        %v1361 = vld [vmem:[#allocation3 + $0xb0] sm:$0xff]
        %v1362 = vld [vmem:[#allocation3 + $0xb8] sm:$0xff]
        %v1363 = vld [vmem:[#allocation3 + $0xc0] sm:$0xff]
        %v1364 = vld [vmem:[#allocation3 + $0xc8] sm:$0xff]
        %v1365 = vld [vmem:[#allocation3 + $0xd0] sm:$0xff]
        %v1366 = vld [vmem:[#allocation3 + $0xd8] sm:$0xff]
        %v1367 = vld [vmem:[#allocation3 + $0xe0] sm:$0xff]
        %v1368 = vld [vmem:[#allocation3 + $0xe8] sm:$0xff]
        %v1369 = vld [vmem:[#allocation3 + $0xf0] sm:$0xff]
        %v1370 = vld [vmem:[#allocation3 + $0xf8] sm:$0xff]
        %v1371 = vld [vmem:[#allocation3 + $0x100] sm:$0xff]
        %v1372 = vld [vmem:[#allocation3 + $0x108] sm:$0xff]
        %v1373 = vld [vmem:[#allocation3 + $0x110] sm:$0xff]
        %v1374 = vld [vmem:[#allocation3 + $0x118] sm:$0xff]
        %v1375 = vld [vmem:[%s7] sm:$0xff]
        %1377 = vset.pattern.permute.xlu0 0
        %1378 = vperm.xlu0 %1377, %v1375
        %v1379 = vpop.permute.xlu0 %1378
        %v1382 = vsel %vm604, %v1338, 0
        %1384 = vmatprep.subr.mxu0 %v1340
        %1385 = vmatpush1.msra.mxu0 %v1339
        %1386 = vmatprep.subr.mxu0 %v1344
        %1387 = vmatpush1.msra.mxu0 %v1343
        %1388 = vmatprep.subr.mxu0 %v1348
        %1389 = vmatpush1.msra.mxu0 %v1347
        %1390 = vmatprep.subr.mxu0 %v1352
        %1391 = vmatpush1.msra.mxu0 %v1351
        %1392 = vmatprep.subr.mxu0 %v1356
        %1393 = vmatpush1.msra.mxu0 %v1355
        %1394 = vmatprep.subr.mxu0 %v1360
        %1395 = vmatpush1.msra.mxu0 %v1359
        %1396 = vmatprep.subr.mxu0 %v1364
        %1397 = vmatpush1.msra.mxu0 %v1363
        %1398 = vmatprep.subr.mxu0 %v1368
        %1399 = vmatpush1.msra.mxu0 %v1367
        %1400 = vmatprep.subr.mxu0 %v1372
        %1401 = vmatpush1.msra.mxu0 %v1371
        %1402 = vmatprep.subr.mxu0 0.0
        %1403 = vmatpush1.msra.mxu0 0.0
        %1404 = vmatprep.subr.mxu0 0.0
        %1405 = vmatpush1.msra.mxu0 0.0
        %1406 = vmatprep.subr.mxu0 0.0
        %1407 = vmatpush1.msra.mxu0 0.0
        %1408 = vmatprep.subr.mxu0 0.0
        %1409 = vmatpush1.msra.mxu0 0.0
        %1410 = vmatprep.subr.mxu0 0.0
        %1411 = vmatpush1.msra.mxu0 0.0
        %1412 = vmatprep.subr.mxu0 0.0
        %1413 = vmatpush1.msra.mxu0 0.0
        %1414 = vmatprep.subr.mxu0 0.0
        %1415 = vmatpush1.msra.mxu0 0.0
        %1416 = vmatprep.subr.mxu0 0.0
        %1417 = vmatpush1.msra.mxu0 0.0
        %1418 = vmatprep.subr.mxu0 0.0
        %1419 = vmatpush1.msra.mxu0 0.0
        %1420 = vmatprep.subr.mxu0 0.0
        %1421 = vmatpush1.msra.mxu0 0.0
        %1422 = vmatprep.subr.mxu0 0.0
        %1423 = vmatpush1.msra.mxu0 0.0
        %1424 = vmatprep.subr.mxu0 0.0
        %1425 = vmatpush1.msra.mxu0 0.0
        %1426 = vmatprep.subr.mxu0 0.0
        %1427 = vmatpush1.msra.mxu0 0.0
        %1428 = vmatprep.subr.mxu0 0.0
        %1429 = vmatpush1.msra.mxu0 0.0
        %1430 = vmatprep.subr.mxu0 0.0
        %1431 = vmatpush1.msra.mxu0 0.0
        %1432 = vmatprep.subr.mxu0 0.0
        %1433 = vmatpush1.msra.mxu0 0.0
        %1434 = vmatprep.subr.mxu0 0.0
        %1435 = vmatpush1.msra.mxu0 0.0
        %1436 = vmatprep.subr.mxu0 0.0
        %1437 = vmatpush1.msra.mxu0 0.0
        %1438 = vmatprep.subr.mxu0 0.0
        %1439 = vmatpush1.msra.mxu0 0.0
        %1440 = vmatprep.subr.mxu0 0.0
        %1441 = vmatpush1.msra.mxu0 0.0
        %1442 = vmatprep.subr.mxu0 0.0
        %1443 = vmatpush1.msra.mxu0 0.0
        %1444 = vmatprep.subr.mxu0 0.0
        %1445 = vmatpush1.msra.mxu0 0.0
        %1446 = vmatprep.subr.mxu0 0.0
        %1447 = vmatpush1.msra.mxu0 0.0
        %1448 = vmatprep.mubr.f32.mxu0 0.0
        %1449 = vmatmul.mubr.f32.gmra.mrb[0].mxu0 %v1382
        %v1450 = vpop.f32.mrb[0].mxu0
        %v1451 = vadd.f32 %v1379, %v1450
        %v1452 = vpop.f32.mrb[0].mxu0
        %v1453 = vadd.f32 %v1379, %v1452
        %1454 = vdwg.mxu0
        %1455 = vmatprep.subr.mxu0 %v1342
        %1456 = vmatpush1.msra.mxu0 %v1341
        %1457 = vmatprep.subr.mxu0 %v1346
        %1458 = vmatpush1.msra.mxu0 %v1345
        %1459 = vmatprep.subr.mxu0 %v1350
        %1460 = vmatpush1.msra.mxu0 %v1349
        %1461 = vmatprep.subr.mxu0 %v1354
        %1462 = vmatpush1.msra.mxu0 %v1353
        %1463 = vmatprep.subr.mxu0 %v1358
        %1464 = vmatpush1.msra.mxu0 %v1357
        %1465 = vmatprep.subr.mxu0 %v1362
        %1466 = vmatpush1.msra.mxu0 %v1361
        %1467 = vmatprep.subr.mxu0 %v1366
        %1468 = vmatpush1.msra.mxu0 %v1365
        %1469 = vmatprep.subr.mxu0 %v1370
        %1470 = vmatpush1.msra.mxu0 %v1369
        %1471 = vmatprep.subr.mxu0 %v1374
        %1472 = vmatpush1.msra.mxu0 %v1373
        %1473 = vmatprep.subr.mxu0 0.0
        %1474 = vmatpush1.msra.mxu0 0.0
        %1475 = vmatprep.subr.mxu0 0.0
        %1476 = vmatpush1.msra.mxu0 0.0
        %1477 = vmatprep.subr.mxu0 0.0
        %1478 = vmatpush1.msra.mxu0 0.0
        %1479 = vmatprep.subr.mxu0 0.0
        %1480 = vmatpush1.msra.mxu0 0.0
        %1481 = vmatprep.subr.mxu0 0.0
        %1482 = vmatpush1.msra.mxu0 0.0
        %1483 = vmatprep.subr.mxu0 0.0
        %1484 = vmatpush1.msra.mxu0 0.0
        %1485 = vmatprep.subr.mxu0 0.0
        %1486 = vmatpush1.msra.mxu0 0.0
        %1487 = vmatprep.subr.mxu0 0.0
        %1488 = vmatpush1.msra.mxu0 0.0
        %1489 = vmatprep.subr.mxu0 0.0
        %1490 = vmatpush1.msra.mxu0 0.0
        %1491 = vmatprep.subr.mxu0 0.0
        %1492 = vmatpush1.msra.mxu0 0.0
        %1493 = vmatprep.subr.mxu0 0.0
        %1494 = vmatpush1.msra.mxu0 0.0
        %1495 = vmatprep.subr.mxu0 0.0
        %1496 = vmatpush1.msra.mxu0 0.0
        %1497 = vmatprep.subr.mxu0 0.0
        %1498 = vmatpush1.msra.mxu0 0.0
        %1499 = vmatprep.subr.mxu0 0.0
        %1500 = vmatpush1.msra.mxu0 0.0
        %1501 = vmatprep.subr.mxu0 0.0
        %1502 = vmatpush1.msra.mxu0 0.0
        %1503 = vmatprep.subr.mxu0 0.0
        %1504 = vmatpush1.msra.mxu0 0.0
        %1505 = vmatprep.subr.mxu0 0.0
        %1506 = vmatpush1.msra.mxu0 0.0
        %1507 = vmatprep.subr.mxu0 0.0
        %1508 = vmatpush1.msra.mxu0 0.0
        %1509 = vmatprep.subr.mxu0 0.0
        %1510 = vmatpush1.msra.mxu0 0.0
        %1511 = vmatprep.subr.mxu0 0.0
        %1512 = vmatpush1.msra.mxu0 0.0
        %1513 = vmatprep.subr.mxu0 0.0
        %1514 = vmatpush1.msra.mxu0 0.0
        %1515 = vmatprep.subr.mxu0 0.0
        %1516 = vmatpush1.msra.mxu0 0.0
        %1517 = vmatprep.subr.mxu0 0.0
        %1518 = vmatpush1.msra.mxu0 0.0
        %1519 = vmatprep.mubr.f32.mxu0 0.0
        %1520 = vmatmul.mubr.f32.gmra.mrb[0].mxu0 %v1382
        %v1521 = vpop.f32.mrb[0].mxu0
        %v1522 = vadd.f32 %v1379, %v1521
        %v1523 = vpop.f32.mrb[0].mxu0
        %v1524 = vadd.f32 %v1379, %v1523
        %1525 = vdwg.mxu0
        %v1526 = vmax.f32 %v1451, 0.0
        %v1527 = vmax.f32 %v1453, 0.0
        %v1528 = vmax.f32 %v1522, 0.0
        %v1529 = vmax.f32 %v1524, 0.0
        %1530 = vst [vmem:[%s339] sm:$0xff] %v1526
        %1531 = vst [vmem:[%s339 + $0x8] sm:$0xff] %v1527
        %s1532 = scalar_lea.vmem %s339, 16 [#allocation9]
        %1533 = vst [vmem:[%s1532] sm:$0xff] %v1528
        %1534 = vst [vmem:[%s1532 + $0x8] sm:$0xff] %v1529
        %s1535 = sand.u32 %s207, 1
        %s1536 = scalar_lea.sflag [#allocation6], %s1535
        %s1537 = sand.u32 %s207, 1
        %s1538 = smul.addr %s1537, 32
        %s1539 = scalar_lea.vmem [#allocation9], %s1538
        // Predicated region
        $region61: #{tpu_custom_call.1} parent=51 // pred_check
          %p1540 = pneg %p217
        $region62: #{tpu_custom_call.1} parent=51 // pred_check_branch
          %1542 = sbr.rel (%p1540) target = $region64
        $region63: #{tpu_custom_call.1} parent=51 // pred_region
          %s1543 = smul.u32 2, %s26
          %s1545 = ssub.s32 512, 512
          %1546 = vsyncadd %s1536, %s1545
          %s1547 = smul.addr %s1543, 2
          %s1548 = smul.addr %s1547, 128
          %s1549 = scalar_lea.hbm %s8, %s1548
          %s1550 = sshll.u32 %s1539, 4
          %s1551 = int_to_ptr.vmem [resolvable:$true] %s1550
          %1556 = dma.vmem_to_hbm [thread:$0]  %s1551, 512, %s1549, %s1536, 256, 256, 16
        $region64: #{tpu_custom_call.1} parent=51 // pred_fallthru
          _
      $region52: #{tpu_custom_call.1} parent=5 // pred_fallthru
        _
      %p1557 = scmp.le.s32.totalorder 2, %s21
      // Predicated region
      $region65: #{tpu_custom_call.1} parent=5 // pred_check
        %p1558 = pneg %p1557
      $region66: #{tpu_custom_call.1} parent=5 // pred_check_branch
        %1560 = sbr.rel (%p1558) target = $region68
      $region67: #{tpu_custom_call.1} parent=5 // pred_region
        %s1561 = ssub.s32 %s21, 2
        // Predicated region
        $region69: #{tpu_custom_call.1} parent=67 // pred_check
          %p1562 = pneg %p223
        $region70: #{tpu_custom_call.1} parent=67 // pred_check_branch
          %1564 = sbr.rel (%p1562) target = $region72
        $region71: #{tpu_custom_call.1} parent=67 // pred_region
          %s1565 = sand.u32 %s208, 1
          %s1566 = scalar_lea.sflag [#allocation6], %s1565
          %s1567 = sand.u32 %s208, 1
          %s1568 = smul.addr %s1567, 32
          %s1569 = scalar_lea.vmem [#allocation9], %s1568
          %1570 = dma.done %s1566, 512
        $region72: #{tpu_custom_call.1} parent=67 // pred_fallthru
          _
      $region68: #{tpu_custom_call.1} parent=5 // pred_fallthru
        _
    $region6: #{tpu_custom_call.1} parent=1 // loop_footer
      %s25 = sadd.s32 1, %s21
    $region7: #{tpu_custom_call.1} parent=1 // loop_footer_branch
      %20 = sbr.rel target = $region3
    $region8: #{tpu_custom_call.1} parent=1 // loop_exit
      _
    %1571 = vsyncpa [#allocation5], 1
    %s1572 = scalar_lea.sflag [#allocation5], 1
    %1573 = vsyncpa %s1572, 1
    %1574 = vsyncpa [#allocation8], 1
    %1575 = vsyncpa [#allocation6], 1
    %s1576 = scalar_lea.sflag [#allocation6], 1
    %1577 = vsyncpa %s1576, 1

</llo_original>
